<compile_context>
chip_gen: v7x
topology: tpu7x:2x2x1
jax: 0.10.0
libtpu: 0.0.40
codegen_flags: <defaults>
</compile_context>

<pallas_src>
import functools

import jax
import jax.numpy as jnp
from jax.experimental import pallas as pl
from jax.experimental.pallas import tpu as pltpu


def _round_up(x, m):
    return (x + m - 1) // m * m


def _mlp_kernel(x_ref,
                w0_hbm, b0_hbm, wh_hbm, bh_hbm, wo_hbm, bo_hbm,
                o_ref,
                w0_v, b0_v, wh_v, bh_v, wo_v, bo_v, sem,
                *, num_hidden_layers, compute_dtype):
    # Load every weight/bias into VMEM scratch exactly once (grid step 0).
    # Scratch persists across grid iterations, so all later batch tiles reuse
    # the resident, single-buffered weights with no further HBM traffic.
    @pl.when(pl.program_id(0) == 0)
    def _load_weights():
        copies = (
            pltpu.make_async_copy(w0_hbm, w0_v, sem.at[0]),
            pltpu.make_async_copy(b0_hbm, b0_v, sem.at[1]),
            pltpu.make_async_copy(wh_hbm, wh_v, sem.at[2]),
            pltpu.make_async_copy(bh_hbm, bh_v, sem.at[3]),
            pltpu.make_async_copy(wo_hbm, wo_v, sem.at[4]),
            pltpu.make_async_copy(bo_hbm, bo_v, sem.at[5]),
        )
        for c in copies:
            c.start()
        for c in copies:
            c.wait()

    # First layer: (tm, d_in) @ (d_in, H) + b -> ReLU.
    # bf16 MXU inputs, f32 accumulation.
    x = x_ref[...].astype(compute_dtype)
    h = jnp.dot(x, w0_v[...], preferred_element_type=jnp.float32)
    h = jnp.maximum(h + b0_v[...], 0.0)

    # Hidden layers (statically unrolled): (tm, H) @ (H, H) + b -> ReLU.
    for i in range(num_hidden_layers):
        h = jnp.dot(h.astype(compute_dtype), wh_v[i],
                    preferred_element_type=jnp.float32)
        h = jnp.maximum(h + bh_v[i], 0.0)

    # Output layer: (tm, H) @ (H, d_out_padded) + b, no activation.
    out = jnp.dot(h.astype(compute_dtype), wo_v[...],
                  preferred_element_type=jnp.float32)
    o_ref[...] = (out + bo_v[...]).astype(o_ref.dtype)


def h_theta_forward(x, params, *, tile_m=128, compute_dtype=jnp.bfloat16):
    """Fused MLP forward matching H_theta. x: (N, input_dim) float32."""
    w0, b0, wh, bh, wo, bo = params
    N, d_in = x.shape
    H = w0.shape[1]
    d_out = wo.shape[1]
    num_hidden = wh.shape[0]

    # ---- Lane/sublane-friendly padding (pure layout plumbing, exact math) ----
    Hp = _round_up(H, 128)           # hidden width -> multiple of 128 lanes
    d_out_p = _round_up(d_out, 128)  # lane-dense output stores (no vst.msk)
    Np = _round_up(N, tile_m)        # batch -> multiple of the batch tile

    f32 = jnp.float32
    x_p = jnp.zeros((Np, d_in), f32).at[:N].set(x.astype(f32))

    w0_p = jnp.zeros((d_in, Hp), f32).at[:, :H].set(w0)
    b0_p = jnp.zeros((1, Hp), f32).at[:, :H].set(b0)
    wo_p = jnp.zeros((Hp, d_out_p), f32).at[:H, :d_out].set(wo)
    bo_p = jnp.zeros((1, d_out_p), f32).at[:, :d_out].set(bo)

    if num_hidden >= 1:
        wh_p = jnp.zeros((num_hidden, Hp, Hp), f32).at[:, :H, :H].set(wh)
        bh_p = jnp.zeros((num_hidden, 1, Hp), f32).at[:, :, :H].set(bh)
    else:
        # num_layers == 1: insert a single identity "hidden" layer.
        # h is already non-negative after the first ReLU, so ReLU(h @ I) == h
        # and the math is unchanged.
        num_hidden = 1
        wh_p = jnp.eye(Hp, dtype=f32)[None]
        bh_p = jnp.zeros((1, 1, Hp), f32)

    # bf16 weights (f32 accumulation in kernel); small biases stay f32.
    w0_p = w0_p.astype(compute_dtype)
    wh_p = wh_p.astype(compute_dtype)
    wo_p = wo_p.astype(compute_dtype)

    weight_arrays = (w0_p, b0_p, wh_p, bh_p, wo_p, bo_p)
    weight_bytes = sum(int(a.size) * a.dtype.itemsize for a in weight_arrays)
    io_tile_bytes = tile_m * (d_in + d_out_p) * 4
    vmem_limit = int(min(max(weight_bytes + 4 * io_tile_bytes + (8 << 20),
                             32 << 20),
                         100 << 20))

    flops = 2 * Np * (d_in * Hp + num_hidden * Hp * Hp + Hp * d_out_p)
    bytes_accessed = int(x_p.size * 4 + Np * d_out_p * 4 + weight_bytes)
    cost = pl.CostEstimate(flops=flops, transcendentals=0,
                           bytes_accessed=bytes_accessed)

    kernel = functools.partial(_mlp_kernel,
                               num_hidden_layers=num_hidden,
                               compute_dtype=compute_dtype)

    out_p = pl.pallas_call(
        kernel,
        out_shape=jax.ShapeDtypeStruct((Np, d_out_p), x.dtype),
        grid_spec=pltpu.PrefetchScalarGridSpec(
            num_scalar_prefetch=0,
            grid=(Np // tile_m,),
            in_specs=[
                pl.BlockSpec((tile_m, d_in), lambda i: (i, 0)),  # x batch tile
                # Weights stay in HBM; kernel DMAs them into VMEM scratch once.
                pl.BlockSpec(memory_space=pl.ANY),               # W0
                pl.BlockSpec(memory_space=pl.ANY),               # b0
                pl.BlockSpec(memory_space=pl.ANY),               # Wh stack
                pl.BlockSpec(memory_space=pl.ANY),               # bh stack
                pl.BlockSpec(memory_space=pl.ANY),               # W_out
                pl.BlockSpec(memory_space=pl.ANY),               # b_out
            ],
            out_specs=pl.BlockSpec((tile_m, d_out_p), lambda i: (i, 0)),
            scratch_shapes=[
                pltpu.VMEM((d_in, Hp), compute_dtype),            # W0 resident
                pltpu.VMEM((1, Hp), jnp.float32),                 # b0 resident
                pltpu.VMEM((num_hidden, Hp, Hp), compute_dtype),  # Wh resident
                pltpu.VMEM((num_hidden, 1, Hp), jnp.float32),     # bh resident
                pltpu.VMEM((Hp, d_out_p), compute_dtype),         # W_out
                pltpu.VMEM((1, d_out_p), jnp.float32),            # b_out
                pltpu.SemaphoreType.DMA((6,)),
            ],
        ),
        compiler_params=pltpu.CompilerParams(
            # Weight residency (load on step 0, reuse later) requires the batch
            # axis to run sequentially on a single core.
            dimension_semantics=("arbitrary",),
            vmem_limit_bytes=vmem_limit,
        ),
        cost_estimate=cost,
    )(x_p, w0_p, b0_p, wh_p, bh_p, wo_p, bo_p)

    return out_p[:N, :d_out]


def make_params(key, input_dim, output_dim, num_layers, num_neurons):
    """Deterministic synthetic parameters (nn.Linear weights stored transposed
    as (in_features, out_features))."""
    keys = jax.random.split(key, 6)
    scale = 0.05

    w0 = scale * jax.random.normal(keys[0], (input_dim, num_neurons), jnp.float32)
    b0 = scale * jax.random.normal(keys[1], (1, num_neurons), jnp.float32)

    n_hidden = num_layers - 1
    if n_hidden > 0:
        wh = scale * jax.random.normal(
            keys[2], (n_hidden, num_neurons, num_neurons), jnp.float32)
        bh = scale * jax.random.normal(
            keys[3], (n_hidden, 1, num_neurons), jnp.float32)
    else:
        wh = jnp.zeros((0, num_neurons, num_neurons), jnp.float32)
        bh = jnp.zeros((0, 1, num_neurons), jnp.float32)

    wo = scale * jax.random.normal(keys[4], (num_neurons, output_dim), jnp.float32)
    bo = scale * jax.random.normal(keys[5], (1, output_dim), jnp.float32)
    return (w0, b0, wh, bh, wo, bo)


def reference_forward(x, params):
    """Pure-JAX f32 reference (mirrors the PyTorch nn.Sequential forward)."""
    w0, b0, wh, bh, wo, bo = params
    h = jnp.maximum(x @ w0 + b0, 0.0)
    for i in range(wh.shape[0]):
        h = jnp.maximum(h @ wh[i] + bh[i], 0.0)
    return h @ wo + bo


if __name__ == "__main__":
    # Small shapes consistent with the module (defaults scaled down).
    INPUT_DIM = 8
    OUTPUT_DIM = 3
    NUM_LAYERS = 3       # module default is 5
    NUM_NEURONS = 256    # module default is 2000; lane-aligned demo size
    BATCH = 256          # 2 batch tiles of tile_m=128

    key = jax.random.PRNGKey(0)
    kx, kp = jax.random.split(key)
    x = jax.random.normal(kx, (BATCH, INPUT_DIM), jnp.float32)
    params = make_params(kp, INPUT_DIM, OUTPUT_DIM, NUM_LAYERS, NUM_NEURONS)

    out = h_theta_forward(x, params, tile_m=128)
    out = jax.block_until_ready(out)

    ref = reference_forward(x, params)
    assert out.shape == (BATCH, OUTPUT_DIM)
    # bf16 matmul inputs with f32 accumulation -> relaxed tolerance vs f32 ref.
    assert jnp.allclose(out, ref, atol=2e-2, rtol=2e-2), "mismatch vs reference"

    print("KERNEL_OK")
</pallas_src>

<mosaic_0001>
module attributes {stable_mosaic.version = 11 : i64} {
  func.func @_mlp_kernel(%arg0: i32, %arg1: memref<128x8xf32, #tpu.memory_space<vmem>>, %arg2: memref<8x256xbf16, #tpu.memory_space<any>>, %arg3: memref<1x256xf32, #tpu.memory_space<any>>, %arg4: memref<2x256x256xbf16, #tpu.memory_space<any>>, %arg5: memref<2x1x256xf32, #tpu.memory_space<any>>, %arg6: memref<256x128xbf16, #tpu.memory_space<any>>, %arg7: memref<1x128xf32, #tpu.memory_space<any>>, %arg8: memref<128x128xf32, #tpu.memory_space<vmem>>, %arg9: memref<8x256xbf16, #tpu.memory_space<vmem>>, %arg10: memref<1x256xf32, #tpu.memory_space<vmem>>, %arg11: memref<2x256x256xbf16, #tpu.memory_space<vmem>>, %arg12: memref<2x1x256xf32, #tpu.memory_space<vmem>>, %arg13: memref<256x128xbf16, #tpu.memory_space<vmem>>, %arg14: memref<1x128xf32, #tpu.memory_space<vmem>>, %arg15: memref<6x!tpu.dma_semaphore, #tpu.memory_space<semaphore_mem>>) attributes {dimension_semantics = [#tpu.dimension_semantics<arbitrary>], iteration_bounds = array<i64: 2>, scalar_prefetch = 0 : i64, scratch_operands = 7 : i64, tpu.core_type = #tpu.core_type<tc>, window_params = [{transform_indices = @transform_0, window_bounds = array<i64: 128, 8>}, {}, {}, {}, {}, {}, {}, {transform_indices = @transform_7, window_bounds = array<i64: 128, 128>}]} {
    %c0_i32 = arith.constant 0 : i32
    %0 = arith.cmpi eq, %arg0, %c0_i32 : i32
    %1 = arith.extui %0 : i1 to i32
    %c0_i32_0 = arith.constant 0 : i32
    %2 = arith.cmpi ne, %1, %c0_i32_0 : i32
    scf.if %2 {
      %c0_i32_29 = arith.constant 0 : i32
      %39 = tpu.memref_slice %arg15[%c0_i32_29] : memref<6x!tpu.dma_semaphore, #tpu.memory_space<semaphore_mem>> -> memref<1x!tpu.dma_semaphore, #tpu.memory_space<semaphore_mem>>
      %40 = tpu.memref_squeeze %39 : memref<1x!tpu.dma_semaphore, #tpu.memory_space<semaphore_mem>> -> memref<!tpu.dma_semaphore, #tpu.memory_space<semaphore_mem>>
      tpu.enqueue_dma source(%arg2 : memref<8x256xbf16, #tpu.memory_space<any>>) target(%arg9 : memref<8x256xbf16, #tpu.memory_space<vmem>>) target_semaphore(%40 : memref<!tpu.dma_semaphore, #tpu.memory_space<semaphore_mem>>)
      %c1_i32 = arith.constant 1 : i32
      %41 = tpu.memref_slice %arg15[%c1_i32] : memref<6x!tpu.dma_semaphore, #tpu.memory_space<semaphore_mem>> -> memref<1x!tpu.dma_semaphore, #tpu.memory_space<semaphore_mem>>
      %42 = tpu.memref_squeeze %41 : memref<1x!tpu.dma_semaphore, #tpu.memory_space<semaphore_mem>> -> memref<!tpu.dma_semaphore, #tpu.memory_space<semaphore_mem>>
      tpu.enqueue_dma source(%arg3 : memref<1x256xf32, #tpu.memory_space<any>>) target(%arg10 : memref<1x256xf32, #tpu.memory_space<vmem>>) target_semaphore(%42 : memref<!tpu.dma_semaphore, #tpu.memory_space<semaphore_mem>>)
      %c2_i32 = arith.constant 2 : i32
      %43 = tpu.memref_slice %arg15[%c2_i32] : memref<6x!tpu.dma_semaphore, #tpu.memory_space<semaphore_mem>> -> memref<1x!tpu.dma_semaphore, #tpu.memory_space<semaphore_mem>>
      %44 = tpu.memref_squeeze %43 : memref<1x!tpu.dma_semaphore, #tpu.memory_space<semaphore_mem>> -> memref<!tpu.dma_semaphore, #tpu.memory_space<semaphore_mem>>
      tpu.enqueue_dma source(%arg4 : memref<2x256x256xbf16, #tpu.memory_space<any>>) target(%arg11 : memref<2x256x256xbf16, #tpu.memory_space<vmem>>) target_semaphore(%44 : memref<!tpu.dma_semaphore, #tpu.memory_space<semaphore_mem>>)
      %c3_i32 = arith.constant 3 : i32
      %45 = tpu.memref_slice %arg15[%c3_i32] : memref<6x!tpu.dma_semaphore, #tpu.memory_space<semaphore_mem>> -> memref<1x!tpu.dma_semaphore, #tpu.memory_space<semaphore_mem>>
      %46 = tpu.memref_squeeze %45 : memref<1x!tpu.dma_semaphore, #tpu.memory_space<semaphore_mem>> -> memref<!tpu.dma_semaphore, #tpu.memory_space<semaphore_mem>>
      tpu.enqueue_dma source(%arg5 : memref<2x1x256xf32, #tpu.memory_space<any>>) target(%arg12 : memref<2x1x256xf32, #tpu.memory_space<vmem>>) target_semaphore(%46 : memref<!tpu.dma_semaphore, #tpu.memory_space<semaphore_mem>>)
      %c4_i32 = arith.constant 4 : i32
      %47 = tpu.memref_slice %arg15[%c4_i32] : memref<6x!tpu.dma_semaphore, #tpu.memory_space<semaphore_mem>> -> memref<1x!tpu.dma_semaphore, #tpu.memory_space<semaphore_mem>>
      %48 = tpu.memref_squeeze %47 : memref<1x!tpu.dma_semaphore, #tpu.memory_space<semaphore_mem>> -> memref<!tpu.dma_semaphore, #tpu.memory_space<semaphore_mem>>
      tpu.enqueue_dma source(%arg6 : memref<256x128xbf16, #tpu.memory_space<any>>) target(%arg13 : memref<256x128xbf16, #tpu.memory_space<vmem>>) target_semaphore(%48 : memref<!tpu.dma_semaphore, #tpu.memory_space<semaphore_mem>>)
      %c5_i32 = arith.constant 5 : i32
      %49 = tpu.memref_slice %arg15[%c5_i32] : memref<6x!tpu.dma_semaphore, #tpu.memory_space<semaphore_mem>> -> memref<1x!tpu.dma_semaphore, #tpu.memory_space<semaphore_mem>>
      %50 = tpu.memref_squeeze %49 : memref<1x!tpu.dma_semaphore, #tpu.memory_space<semaphore_mem>> -> memref<!tpu.dma_semaphore, #tpu.memory_space<semaphore_mem>>
      tpu.enqueue_dma source(%arg7 : memref<1x128xf32, #tpu.memory_space<any>>) target(%arg14 : memref<1x128xf32, #tpu.memory_space<vmem>>) target_semaphore(%50 : memref<!tpu.dma_semaphore, #tpu.memory_space<semaphore_mem>>)
      %c0_i32_30 = arith.constant 0 : i32
      %51 = tpu.memref_slice %arg15[%c0_i32_30] : memref<6x!tpu.dma_semaphore, #tpu.memory_space<semaphore_mem>> -> memref<1x!tpu.dma_semaphore, #tpu.memory_space<semaphore_mem>>
      %52 = tpu.memref_squeeze %51 : memref<1x!tpu.dma_semaphore, #tpu.memory_space<semaphore_mem>> -> memref<!tpu.dma_semaphore, #tpu.memory_space<semaphore_mem>>
      tpu.wait_dma2 semaphore(%52 : memref<!tpu.dma_semaphore, #tpu.memory_space<semaphore_mem>>) src(%arg2 : memref<8x256xbf16, #tpu.memory_space<any>>) dst(%arg9 : memref<8x256xbf16, #tpu.memory_space<vmem>>)
      %c1_i32_31 = arith.constant 1 : i32
      %53 = tpu.memref_slice %arg15[%c1_i32_31] : memref<6x!tpu.dma_semaphore, #tpu.memory_space<semaphore_mem>> -> memref<1x!tpu.dma_semaphore, #tpu.memory_space<semaphore_mem>>
      %54 = tpu.memref_squeeze %53 : memref<1x!tpu.dma_semaphore, #tpu.memory_space<semaphore_mem>> -> memref<!tpu.dma_semaphore, #tpu.memory_space<semaphore_mem>>
      tpu.wait_dma2 semaphore(%54 : memref<!tpu.dma_semaphore, #tpu.memory_space<semaphore_mem>>) src(%arg3 : memref<1x256xf32, #tpu.memory_space<any>>) dst(%arg10 : memref<1x256xf32, #tpu.memory_space<vmem>>)
      %c2_i32_32 = arith.constant 2 : i32
      %55 = tpu.memref_slice %arg15[%c2_i32_32] : memref<6x!tpu.dma_semaphore, #tpu.memory_space<semaphore_mem>> -> memref<1x!tpu.dma_semaphore, #tpu.memory_space<semaphore_mem>>
      %56 = tpu.memref_squeeze %55 : memref<1x!tpu.dma_semaphore, #tpu.memory_space<semaphore_mem>> -> memref<!tpu.dma_semaphore, #tpu.memory_space<semaphore_mem>>
      tpu.wait_dma2 semaphore(%56 : memref<!tpu.dma_semaphore, #tpu.memory_space<semaphore_mem>>) src(%arg4 : memref<2x256x256xbf16, #tpu.memory_space<any>>) dst(%arg11 : memref<2x256x256xbf16, #tpu.memory_space<vmem>>)
      %c3_i32_33 = arith.constant 3 : i32
      %57 = tpu.memref_slice %arg15[%c3_i32_33] : memref<6x!tpu.dma_semaphore, #tpu.memory_space<semaphore_mem>> -> memref<1x!tpu.dma_semaphore, #tpu.memory_space<semaphore_mem>>
      %58 = tpu.memref_squeeze %57 : memref<1x!tpu.dma_semaphore, #tpu.memory_space<semaphore_mem>> -> memref<!tpu.dma_semaphore, #tpu.memory_space<semaphore_mem>>
      tpu.wait_dma2 semaphore(%58 : memref<!tpu.dma_semaphore, #tpu.memory_space<semaphore_mem>>) src(%arg5 : memref<2x1x256xf32, #tpu.memory_space<any>>) dst(%arg12 : memref<2x1x256xf32, #tpu.memory_space<vmem>>)
      %c4_i32_34 = arith.constant 4 : i32
      %59 = tpu.memref_slice %arg15[%c4_i32_34] : memref<6x!tpu.dma_semaphore, #tpu.memory_space<semaphore_mem>> -> memref<1x!tpu.dma_semaphore, #tpu.memory_space<semaphore_mem>>
      %60 = tpu.memref_squeeze %59 : memref<1x!tpu.dma_semaphore, #tpu.memory_space<semaphore_mem>> -> memref<!tpu.dma_semaphore, #tpu.memory_space<semaphore_mem>>
      tpu.wait_dma2 semaphore(%60 : memref<!tpu.dma_semaphore, #tpu.memory_space<semaphore_mem>>) src(%arg6 : memref<256x128xbf16, #tpu.memory_space<any>>) dst(%arg13 : memref<256x128xbf16, #tpu.memory_space<vmem>>)
      %c5_i32_35 = arith.constant 5 : i32
      %61 = tpu.memref_slice %arg15[%c5_i32_35] : memref<6x!tpu.dma_semaphore, #tpu.memory_space<semaphore_mem>> -> memref<1x!tpu.dma_semaphore, #tpu.memory_space<semaphore_mem>>
      %62 = tpu.memref_squeeze %61 : memref<1x!tpu.dma_semaphore, #tpu.memory_space<semaphore_mem>> -> memref<!tpu.dma_semaphore, #tpu.memory_space<semaphore_mem>>
      tpu.wait_dma2 semaphore(%62 : memref<!tpu.dma_semaphore, #tpu.memory_space<semaphore_mem>>) src(%arg7 : memref<1x128xf32, #tpu.memory_space<any>>) dst(%arg14 : memref<1x128xf32, #tpu.memory_space<vmem>>)
    } else {
    }
    %c0 = arith.constant 0 : index
    %c0_1 = arith.constant 0 : index
    %3 = vector.load %arg1[%c0, %c0_1] : memref<128x8xf32, #tpu.memory_space<vmem>>, vector<128x8xf32>
    %4 = arith.truncf %3 : vector<128x8xf32> to vector<128x8xbf16>
    %c0_2 = arith.constant 0 : index
    %c0_3 = arith.constant 0 : index
    %5 = vector.load %arg9[%c0_2, %c0_3] : memref<8x256xbf16, #tpu.memory_space<vmem>>, vector<8x256xbf16>
    %cst = arith.constant dense<0.000000e+00> : vector<128x256xf32>
    %6 = tpu.matmul %4, %5, %cst {dimension_numbers = #tpu.dot_dimension_numbers<[1], [0], [0], [1], [0, 0, 1, 1], [], []>} : vector<128x8xbf16>, vector<8x256xbf16>, vector<128x256xf32> -> vector<128x256xf32>
    %c0_4 = arith.constant 0 : index
    %c0_5 = arith.constant 0 : index
    %7 = vector.load %arg10[%c0_4, %c0_5] : memref<1x256xf32, #tpu.memory_space<vmem>>, vector<1x256xf32>
    %8 = vector.broadcast %7 : vector<1x256xf32> to vector<128x256xf32>
    %9 = arith.addf %6, %8 : vector<128x256xf32>
    %cst_6 = arith.constant 0.000000e+00 : f32
    %10 = vector.broadcast %cst_6 : f32 to vector<128x256xf32>
    %11 = arith.maximumf %9, %10 : vector<128x256xf32>
    %12 = arith.truncf %11 : vector<128x256xf32> to vector<128x256xbf16>
    %c0_7 = arith.constant 0 : index
    %c0_8 = arith.constant 0 : index
    %c0_9 = arith.constant 0 : index
    %13 = vector.load %arg11[%c0_7, %c0_8, %c0_9] : memref<2x256x256xbf16, #tpu.memory_space<vmem>>, vector<1x256x256xbf16>
    %14 = vector.shape_cast %13 : vector<1x256x256xbf16> to vector<256x256xbf16>
    %cst_10 = arith.constant dense<0.000000e+00> : vector<128x256xf32>
    %15 = tpu.matmul %12, %14, %cst_10 {dimension_numbers = #tpu.dot_dimension_numbers<[1], [0], [0], [1], [0, 0, 1, 1], [], []>} : vector<128x256xbf16>, vector<256x256xbf16>, vector<128x256xf32> -> vector<128x256xf32>
    %c0_11 = arith.constant 0 : index
    %c0_12 = arith.constant 0 : index
    %c0_13 = arith.constant 0 : index
    %16 = vector.load %arg12[%c0_11, %c0_12, %c0_13] : memref<2x1x256xf32, #tpu.memory_space<vmem>>, vector<1x1x256xf32>
    %17 = vector.shape_cast %16 : vector<1x1x256xf32> to vector<1x256xf32>
    %18 = vector.broadcast %17 : vector<1x256xf32> to vector<128x256xf32>
    %19 = arith.addf %15, %18 : vector<128x256xf32>
    %cst_14 = arith.constant 0.000000e+00 : f32
    %20 = vector.broadcast %cst_14 : f32 to vector<128x256xf32>
    %21 = arith.maximumf %19, %20 : vector<128x256xf32>
    %22 = arith.truncf %21 : vector<128x256xf32> to vector<128x256xbf16>
    %c1 = arith.constant 1 : index
    %c0_15 = arith.constant 0 : index
    %c0_16 = arith.constant 0 : index
    %23 = vector.load %arg11[%c1, %c0_15, %c0_16] : memref<2x256x256xbf16, #tpu.memory_space<vmem>>, vector<1x256x256xbf16>
    %24 = vector.shape_cast %23 : vector<1x256x256xbf16> to vector<256x256xbf16>
    %cst_17 = arith.constant dense<0.000000e+00> : vector<128x256xf32>
    %25 = tpu.matmul %22, %24, %cst_17 {dimension_numbers = #tpu.dot_dimension_numbers<[1], [0], [0], [1], [0, 0, 1, 1], [], []>} : vector<128x256xbf16>, vector<256x256xbf16>, vector<128x256xf32> -> vector<128x256xf32>
    %c1_18 = arith.constant 1 : index
    %c0_19 = arith.constant 0 : index
    %c0_20 = arith.constant 0 : index
    %26 = vector.load %arg12[%c1_18, %c0_19, %c0_20] : memref<2x1x256xf32, #tpu.memory_space<vmem>>, vector<1x1x256xf32>
    %27 = vector.shape_cast %26 : vector<1x1x256xf32> to vector<1x256xf32>
    %28 = vector.broadcast %27 : vector<1x256xf32> to vector<128x256xf32>
    %29 = arith.addf %25, %28 : vector<128x256xf32>
    %cst_21 = arith.constant 0.000000e+00 : f32
    %30 = vector.broadcast %cst_21 : f32 to vector<128x256xf32>
    %31 = arith.maximumf %29, %30 : vector<128x256xf32>
    %32 = arith.truncf %31 : vector<128x256xf32> to vector<128x256xbf16>
    %c0_22 = arith.constant 0 : index
    %c0_23 = arith.constant 0 : index
    %33 = vector.load %arg13[%c0_22, %c0_23] : memref<256x128xbf16, #tpu.memory_space<vmem>>, vector<256x128xbf16>
    %cst_24 = arith.constant dense<0.000000e+00> : vector<128x128xf32>
    %34 = tpu.matmul %32, %33, %cst_24 {dimension_numbers = #tpu.dot_dimension_numbers<[1], [0], [0], [1], [0, 0, 1, 1], [], []>} : vector<128x256xbf16>, vector<256x128xbf16>, vector<128x128xf32> -> vector<128x128xf32>
    %c0_25 = arith.constant 0 : index
    %c0_26 = arith.constant 0 : index
    %35 = vector.load %arg14[%c0_25, %c0_26] : memref<1x128xf32, #tpu.memory_space<vmem>>, vector<1x128xf32>
    %36 = vector.broadcast %35 : vector<1x128xf32> to vector<128x128xf32>
    %37 = arith.addf %34, %36 : vector<128x128xf32>
    %c0_27 = arith.constant 0 : index
    %c0_28 = arith.constant 0 : index
    %38 = vector.load %arg8[%c0_27, %c0_28] : memref<128x128xf32, #tpu.memory_space<vmem>>, vector<128x128xf32>
    tpu.vector_store %arg8[%c0_27, %c0_28], %37 {strides = array<i32>} : memref<128x128xf32, #tpu.memory_space<vmem>>, vector<128x128xf32>,
    return
  }
  func.func @transform_0(%arg0: i32) -> (i32, i32) {
    %c0_i32 = arith.constant 0 : i32
    %c0_i32_0 = arith.constant 0 : i32
    return %arg0, %c0_i32 : i32, i32
  }
  func.func @transform_7(%arg0: i32) -> (i32, i32) {
    %c0_i32 = arith.constant 0 : i32
    %c0_i32_0 = arith.constant 0 : i32
    return %arg0, %c0_i32 : i32, i32
  }
}

</mosaic_0001>

<llo_original>
// kernel: tpu_custom_call.1
$region0: #{tpu_custom_call.1}
  #allocation0 [shape = 'u32[]', space=smem, size = 0x4, offset = 0x4, fixed_abs, tag = 'smem constant byte address 0x4 - core index']
  #allocation1 [shape = 'u32[144,128]{1,0:T(1,128)}', space=vmem, size = 0x12000, scoped, tag = 'internal scratch']
  #allocation2 [shape = 'bf16[8,256]{1,0:T(8,128)(2,1)}', space=vmem, size = 0x1000, scoped, tag = 'scratch operand']
  #allocation3 [shape = 'f32[1,256]{1,0:T(1,128)}', space=vmem, size = 0x400, scoped, tag = 'scratch operand']
  #allocation4 [shape = 'bf16[2,256,256]{2,1,0:T(16,128)(2,1)}', space=vmem, size = 0x40000, scoped, tag = 'scratch operand']
  #allocation5 [shape = 'f32[2,1,256]{2,1,0:T(1,128)}', space=vmem, size = 0x800, scoped, tag = 'scratch operand']
  #allocation6 [shape = 'bf16[256,128]{1,0:T(16,128)(2,1)}', space=vmem, size = 0x10000, scoped, tag = 'scratch operand']
  #allocation7 [shape = 'f32[1,128]{1,0:T(1,128)}', space=vmem, size = 0x200, scoped, tag = 'scratch operand']
  #allocation8 [shape = 's32[6]{0}', space=sflag, size = 0x18, scoped, tag = 'scratch operand']
  #allocation11 [shape = 's32[]', space=sflag, size = 0x4, offset = 0, fixed_abs, tag = 'sflag constant byte address 0x0 - dummy sync flag']
  #allocation12 [shape = 's32[]', space=sflag, size = 0x4, offset = 0, fixed_abs, tag = 'sflag constant byte address 0x0 - dummy sync flag']
  #allocation13 [shape = 's32[]', space=sflag, size = 0x4, offset = 0, fixed_abs, tag = 'sflag constant byte address 0x0 - dummy sync flag']
  #allocation15 [shape = 's32[]', space=sflag, size = 0x4, offset = 0, fixed_abs, tag = 'sflag constant byte address 0x0 - dummy sync flag']
  #allocation16 [shape = 's32[]', space=sflag, size = 0x4, offset = 0, fixed_abs, tag = 'sflag constant byte address 0x0 - dummy sync flag']
  #allocation17 [shape = 's32[]', space=sflag, size = 0x4, offset = 0, fixed_abs, tag = 'sflag constant byte address 0x0 - dummy sync flag']
  %s0 = inlined_call_operand.vmem [shape: f32[256,8], index: 0, kind: input, shape index: {}]
  %s1 = inlined_call_operand.vmem [shape: bf16[8,256], index: 1, kind: input, shape index: {}]
  %s2 = inlined_call_operand.vmem [shape: f32[1,256], index: 2, kind: input, shape index: {}]
  %s3 = inlined_call_operand.hbm [shape: bf16[2,256,256], index: 3, kind: input, shape index: {}]
  %s4 = inlined_call_operand.vmem [shape: f32[2,1,256], index: 4, kind: input, shape index: {}]
  %s5 = inlined_call_operand.vmem [shape: bf16[256,128], index: 5, kind: input, shape index: {}]
  %s6 = inlined_call_operand.vmem [shape: f32[1,128], index: 6, kind: input, shape index: {}]
  %s7 = inlined_call_operand.hbm [shape: f32[256,128], index: 7, kind: output, shape index: {}]
  %s8 = sld [smem:[#allocation0]]
  $region199: #{tpu_custom_call.1} parent=0
    _
  %s10 = ssub.s32 1, %s8
  %s11 = scalar_select 0, %s10, %s8
  $region1: #{tpu_custom_call.1} parent=0
    #allocation9 [shape = 'u8[131072]{0}', space=vmem, size = 0x20000, scoped, tag = 'output window, operand 0']
    #allocation10 [shape = 's32[2]{0}', space=sflag, size = 0x8, scoped, tag = 'scoped memory for tpu_custom_call.1']
    %12 = vsyncpa [#allocation10], 0
    %s13 = scalar_lea.sflag [#allocation10], 1
    %14 = vsyncpa %s13, 0
    loop: start=0, step=1, limit=4
    $region2: #{tpu_custom_call.1} parent=1 // loop_pre_header
      _
    $region3: #{tpu_custom_call.1} parent=1 // loop_header
      %s16 = sphi 0, %s20
      %p17 = scmp.ge.s32.totalorder %s16, 4
      %s26 = sphi 0, %s28
      %s29 = sphi 0, %s26
      %s30 = sphi 0, %s29
      %s46 = sphi 0, %s30
      %s52 = sphi 0, %s54
      %s55 = sphi 0, %s52
      %s56 = sphi 0, %s55
      %s72 = sphi 0, %s56
    $region4: #{tpu_custom_call.1} parent=1 // loop_header_branch
      %19 = sbr.rel (%p17) target = $region8
    $region5: #{tpu_custom_call.1} parent=1 // loop_body
      %s21 = ssub.s32 %s16, 1
      %s22 = ssub.s32 %s16, 2
      %s23 = sadd.s32 %s16, 1
      %s24 = ssub.s32 %s16, %s23
      %p25 = scmp.eq.s32.totalorder %s24, 0
      %s27 = sadd.s32 %s26, 1
      %s28 = scalar_select %p25, %s26, %s27
      %p31 = pneg %p25
      %p32 = scmp.eq.s32.totalorder %s16, 1
      %p33 = por %p31, %p32
      %p34 = scmp.ne.s32.totalorder %s26, %s29
      %p35 = scmp.eq.s32.totalorder %s16, 0
      %p36 = por %p34, %p35
      %p37 = scmp.ne.s32.totalorder %s26, %s29
      %p38 = scmp.eq.s32.totalorder %s21, 1
      %p39 = por %p37, %p38
      %p40 = scmp.ne.s32.totalorder %s29, %s30
      %p41 = scmp.eq.s32.totalorder %s21, 0
      %p42 = por %p40, %p41
      %p43 = scmp.ne.s32.totalorder %s29, %s30
      %p44 = scmp.eq.s32.totalorder %s22, 1
      %p45 = por %p43, %p44
      %p47 = scmp.ne.s32.totalorder %s30, %s46
      %p48 = scmp.eq.s32.totalorder %s22, 0
      %p49 = por %p47, %p48
      %s50 = ssub.s32 %s16, %s23
      %p51 = scmp.eq.s32.totalorder %s50, 0
      %s53 = sadd.s32 %s52, 1
      %s54 = scalar_select %p51, %s52, %s53
      %p57 = pneg %p51
      %p58 = scmp.eq.s32.totalorder %s16, 1
      %p59 = por %p57, %p58
      %p60 = scmp.ne.s32.totalorder %s52, %s55
      %p61 = scmp.eq.s32.totalorder %s16, 0
      %p62 = por %p60, %p61
      %p63 = scmp.ne.s32.totalorder %s52, %s55
      %p64 = scmp.eq.s32.totalorder %s21, 1
      %p65 = por %p63, %p64
      %p66 = scmp.ne.s32.totalorder %s55, %s56
      %p67 = scmp.eq.s32.totalorder %s21, 0
      %p68 = por %p66, %p67
      %p69 = scmp.ne.s32.totalorder %s55, %s56
      %p70 = scmp.eq.s32.totalorder %s22, 1
      %p71 = por %p69, %p70
      %p73 = scmp.ne.s32.totalorder %s56, %s72
      %p74 = scmp.eq.s32.totalorder %s22, 0
      %p75 = por %p73, %p74
      %p76 = scmp.le.s32.totalorder 1, %s16
      %p77 = scmp.lt.s32.totalorder %s16, 3
      %p78 = pnand %p76, %p77
      %p79 = pneg %p78
      // Predicated region
      $region9: #{tpu_custom_call.1} parent=5 // pred_check
        _
      $region10: #{tpu_custom_call.1} parent=5 // pred_check_branch
        %81 = sbr.rel (%p78) target = $region12
      $region11: #{tpu_custom_call.1} parent=5 // pred_region
        %s82 = ssub.s32 %s16, 1
      $region12: #{tpu_custom_call.1} parent=5 // pred_fallthru
        _
      %p83 = scmp.lt.s32.totalorder %s16, 2
      // Predicated region
      $region13: #{tpu_custom_call.1} parent=5 // pred_check
        %p84 = pneg %p83
      $region14: #{tpu_custom_call.1} parent=5 // pred_check_branch
        %86 = sbr.rel (%p84) target = $region16
      $region15: #{tpu_custom_call.1} parent=5 // pred_region
        // Predicated region
        $region17: #{tpu_custom_call.1} parent=15 // pred_check
          %p87 = pneg %p36
        $region18: #{tpu_custom_call.1} parent=15 // pred_check_branch
          %89 = sbr.rel (%p87) target = $region20
        $region19: #{tpu_custom_call.1} parent=15 // pred_region
          %s90 = smul.u32 16, %s16
          %p91 = scmp.lt.s32.totalorder %s90, 31
          %s92 = scalar_select %p91, %s90, 31
          %s93 = smul.addr %s92, 8
          %s94 = scalar_lea.vmem %s0, %s93
          %s95 = smul.u32 16, %s16
        $region20: #{tpu_custom_call.1} parent=15 // pred_fallthru
          _
      $region16: #{tpu_custom_call.1} parent=5 // pred_fallthru
        _
      %p96 = scmp.le.s32.totalorder 1, %s16
      %p97 = scmp.lt.s32.totalorder %s16, 3
      %p98 = pnand %p96, %p97
      %p99 = pneg %p98
      // Predicated region
      $region21: #{tpu_custom_call.1} parent=5 // pred_check
        _
      $region22: #{tpu_custom_call.1} parent=5 // pred_check_branch
        %101 = sbr.rel (%p98) target = $region24
      $region23: #{tpu_custom_call.1} parent=5 // pred_region
        %s102 = ssub.s32 %s16, 1
        %s103 = smul.u32 16, %s21
        %p104 = scmp.lt.s32.totalorder %s103, 31
        %s105 = scalar_select %p104, %s103, 31
        %s106 = smul.addr %s105, 8
        %s107 = scalar_lea.vmem %s0, %s106
        %p108 = pneg %p42
        %p109 = pneg %p39
        %p110 = pneg %p68
        %p111 = pneg %p65
        %s112 = sand.u32 %s55, 1
        %s113 = scalar_lea.sflag [#allocation10], %s112
        %s114 = sand.u32 %s55, 1
        %s115 = smul.addr %s114, 128
        %s116 = scalar_lea.vmem [#allocation9], %s115
        %s117 = smul.u32 16, %s21
        %p118 = scmp.lt.s32.totalorder %s117, 31
        %s119 = scalar_select %p118, %s117, 31
        %s120 = smul.addr %s119, 8
        %s121 = scalar_lea.vmem %s0, %s120
        %s122 = smul.u32 16, %s21
        %s123 = smul.u32 16, %s21
        %p125 = scmp.eq.s32.totalorder %s21, 0
        // Predicated region
        $region25: #{tpu_custom_call.1} parent=23 // pred_check
          %p126 = pneg %p125
        $region26: #{tpu_custom_call.1} parent=23 // pred_check_branch
          %128 = sbr.rel (%p126) target = $region28
        $region27: #{tpu_custom_call.1} parent=23 // pred_region
          #allocation14 [shape = 'u32[9]{0}', space=smem, size = 0x24, scoped, tag = 'DMA stride descriptor']
          %p130 = scmp.lt.u32.totalorder 8, 8
          %p131 = pneg %p130
          // Predicated region
          $region29: #{tpu_custom_call.1} parent=27 // pred_check
            _
          $region30: #{tpu_custom_call.1} parent=27 // pred_check_branch
            %133 = sbr.rel (%p130) target = $region32
          $region31: #{tpu_custom_call.1} parent=27 // pred_region
            %s148 = sand.u32 8, 7
            %p149 = scmp.eq.s32.totalorder %s148, 0
            // Predicated region
            $region44: #{tpu_custom_call.1} parent=31 // pred_check
              %p150 = pneg %p149
            $region45: #{tpu_custom_call.1} parent=31 // pred_check_branch
              %152 = sbr.rel (%p150) target = $region47
            $region46: #{tpu_custom_call.1} parent=31 // pred_region
              loop: start=0, step=1, limit=1
              $region48: #{tpu_custom_call.1} parent=46 // loop_pre_header
                _
              $region49: #{tpu_custom_call.1} parent=46 // loop_header
                %s154 = sphi 0, %s158
                %p155 = scmp.ge.s32.totalorder %s154, 1
                %s159 = sphi %s1, %s1
                %s160 = sphi [#allocation2], [#allocation2]
              $region50: #{tpu_custom_call.1} parent=46 // loop_header_branch
                %157 = sbr.rel (%p155) target = $region54
              $region51: #{tpu_custom_call.1} parent=46 // loop_body
                %v161 = vld [vmem:[%s159] sm:$0xff]
                %162 = vst [vmem:[%s160] sm:$0xff] %v161
              $region52: #{tpu_custom_call.1} parent=46 // loop_footer
                %s158 = sadd.s32 1, %s154
              $region53: #{tpu_custom_call.1} parent=46 // loop_footer_branch
                %153 = sbr.rel target = $region49
              $region54: #{tpu_custom_call.1} parent=46 // loop_exit
                _
            $region47: #{tpu_custom_call.1} parent=31 // pred_fallthru
              _
            %p163 = pneg %p149
            // Predicated region
            $region55: #{tpu_custom_call.1} parent=31 // pred_check
              _
            $region56: #{tpu_custom_call.1} parent=31 // pred_check_branch
              %165 = sbr.rel (%p149) target = $region58
            $region57: #{tpu_custom_call.1} parent=31 // pred_region
              %s166 = sand.u32 8, 7
            $region58: #{tpu_custom_call.1} parent=31 // pred_fallthru
              _
          $region32: #{tpu_custom_call.1} parent=27 // pred_fallthru
            _
          // Predicated region
          $region33: #{tpu_custom_call.1} parent=27 // pred_check
            %p134 = pneg %p130
          $region34: #{tpu_custom_call.1} parent=27 // pred_check_branch
            %136 = sbr.rel (%p134) target = $region36
          $region35: #{tpu_custom_call.1} parent=27 // pred_region
            %s137 = sshllo.u32 0, 8
            loop: start=0, step=1, limit=1
            $region37: #{tpu_custom_call.1} parent=35 // loop_pre_header
              _
            $region38: #{tpu_custom_call.1} parent=35 // loop_header
              %s139 = sphi 0, %s143
              %p140 = scmp.ge.s32.totalorder %s139, 1
              %s144 = sphi %s1, %s1
              %s145 = sphi [#allocation2], [#allocation2]
            $region39: #{tpu_custom_call.1} parent=35 // loop_header_branch
              %142 = sbr.rel (%p140) target = $region43
            $region40: #{tpu_custom_call.1} parent=35 // loop_body
              %v146 = vld [vmem:[%s144] sm:%s137]
              %147 = vst [vmem:[%s145] sm:%s137] %v146
            $region41: #{tpu_custom_call.1} parent=35 // loop_footer
              %s143 = sadd.s32 1, %s139
            $region42: #{tpu_custom_call.1} parent=35 // loop_footer_branch
              %138 = sbr.rel target = $region38
            $region43: #{tpu_custom_call.1} parent=35 // loop_exit
              _
          $region36: #{tpu_custom_call.1} parent=27 // pred_fallthru
            _
          // Predicated region
          $region59: #{tpu_custom_call.1} parent=27 // pred_check
            _
          $region60: #{tpu_custom_call.1} parent=27 // pred_check_branch
            %169 = sbr.rel (0) target = $region62
          $region61: #{tpu_custom_call.1} parent=27 // pred_region
            %170 = vsyncadd [#allocation8], 128
          $region62: #{tpu_custom_call.1} parent=27 // pred_fallthru
            _
          %s171 = scalar_lea.sflag [#allocation8], 1
          %p173 = scmp.lt.u32.totalorder 2, 8
          %p174 = pneg %p173
          // Predicated region
          $region63: #{tpu_custom_call.1} parent=27 // pred_check
            _
          $region64: #{tpu_custom_call.1} parent=27 // pred_check_branch
            %176 = sbr.rel (%p173) target = $region66
          $region65: #{tpu_custom_call.1} parent=27 // pred_region
            %s191 = sand.u32 2, 7
            %p192 = scmp.eq.s32.totalorder %s191, 0
            %p193 = pneg %p192
            // Predicated region
            $region78: #{tpu_custom_call.1} parent=65 // pred_check
              _
            $region79: #{tpu_custom_call.1} parent=65 // pred_check_branch
              %195 = sbr.rel (%p192) target = $region81
            $region80: #{tpu_custom_call.1} parent=65 // pred_region
              %s196 = sand.u32 2, 7
              %s197 = ssub.s32 2, %s196
              %s198 = scalar_lea.vmem %s2, %s197
              %s199 = ssub.s32 2, %s196
              %s200 = scalar_lea.vmem [#allocation3], %s199
              %s201 = sshllo.u32 0, %s196
              loop: start=0, step=1, limit=1
              $region82: #{tpu_custom_call.1} parent=80 // loop_pre_header
                _
              $region83: #{tpu_custom_call.1} parent=80 // loop_header
                %s203 = sphi 0, %s207
                %p204 = scmp.ge.s32.totalorder %s203, 1
                %s208 = sphi %s198, %s198
                %s209 = sphi %s200, %s200
              $region84: #{tpu_custom_call.1} parent=80 // loop_header_branch
                %206 = sbr.rel (%p204) target = $region88
              $region85: #{tpu_custom_call.1} parent=80 // loop_body
                %v210 = vld [vmem:[%s208] sm:%s201]
                %211 = vst [vmem:[%s209] sm:%s201] %v210
              $region86: #{tpu_custom_call.1} parent=80 // loop_footer
                %s207 = sadd.s32 1, %s203
              $region87: #{tpu_custom_call.1} parent=80 // loop_footer_branch
                %202 = sbr.rel target = $region83
              $region88: #{tpu_custom_call.1} parent=80 // loop_exit
                _
            $region81: #{tpu_custom_call.1} parent=65 // pred_fallthru
              _
          $region66: #{tpu_custom_call.1} parent=27 // pred_fallthru
            _
          // Predicated region
          $region67: #{tpu_custom_call.1} parent=27 // pred_check
            %p177 = pneg %p173
          $region68: #{tpu_custom_call.1} parent=27 // pred_check_branch
            %179 = sbr.rel (%p177) target = $region70
          $region69: #{tpu_custom_call.1} parent=27 // pred_region
            %s180 = sshllo.u32 0, 2
            loop: start=0, step=1, limit=1
            $region71: #{tpu_custom_call.1} parent=69 // loop_pre_header
              _
            $region72: #{tpu_custom_call.1} parent=69 // loop_header
              %s182 = sphi 0, %s186
              %p183 = scmp.ge.s32.totalorder %s182, 1
              %s187 = sphi %s2, %s2
              %s188 = sphi [#allocation3], [#allocation3]
            $region73: #{tpu_custom_call.1} parent=69 // loop_header_branch
              %185 = sbr.rel (%p183) target = $region77
            $region74: #{tpu_custom_call.1} parent=69 // loop_body
              %v189 = vld [vmem:[%s187] sm:%s180]
              %190 = vst [vmem:[%s188] sm:%s180] %v189
            $region75: #{tpu_custom_call.1} parent=69 // loop_footer
              %s186 = sadd.s32 1, %s182
            $region76: #{tpu_custom_call.1} parent=69 // loop_footer_branch
              %181 = sbr.rel target = $region72
            $region77: #{tpu_custom_call.1} parent=69 // loop_exit
              _
          $region70: #{tpu_custom_call.1} parent=27 // pred_fallthru
            _
          // Predicated region
          $region89: #{tpu_custom_call.1} parent=27 // pred_check
            _
          $region90: #{tpu_custom_call.1} parent=27 // pred_check_branch
            %214 = sbr.rel (0) target = $region92
          $region91: #{tpu_custom_call.1} parent=27 // pred_region
            %215 = vsyncadd %s171, 32
          $region92: #{tpu_custom_call.1} parent=27 // pred_fallthru
            _
          %s216 = scalar_lea.sflag [#allocation8], 2
          %s218 = sshll.u32 1, 14
          %s219 = sxor.u32 4294967295, %s218
          %s221 = sld [smem:[#allocation0]]
          %s222 = sadd.s32 2, %s221
          %s224 = sshll.u32 7, 26
          %s225 = sxor.u32 4294967295, %s224
          %s226 = sand.u32 0, %s225
          %s227 = sshll.u32 %s222, 26
          %s228 = sor.u32 %s226, %s227
          %s229 = sshll.u32 [#allocation4], 4
          %s230 = int_to_ptr.vmem [resolvable:$true] %s229
          %233 = sst [smem:[#allocation14]] 256
          %s234 = scalar_lea.smem [#allocation14], 1
          %235 = sst [smem:[%s234]] 256
          %s236 = scalar_lea.smem [#allocation14], 2
          %237 = sst [smem:[%s236]] 2
          %s238 = scalar_lea.smem [#allocation14], 3
          %239 = sst [smem:[%s238]] 64
          %s240 = scalar_lea.smem [#allocation14], 4
          %241 = sst [smem:[%s240]] 128
          %s242 = scalar_lea.smem [#allocation14], 5
          %243 = sst [smem:[%s242]] 2
          %s244 = scalar_lea.smem [#allocation14], 6
          %245 = sst [smem:[%s244]] 128
          %s246 = scalar_lea.smem [#allocation14], 7
          %247 = sst [smem:[%s246]] 64
          %s248 = scalar_lea.smem [#allocation14], 8
          %249 = sst [smem:[%s248]] 4
          %251 = dma.general %s3, 8192, %s230, %s216, [#allocation13], [#allocation14], %s228, 0
          %s252 = scalar_lea.sflag [#allocation8], 3
          %p254 = scmp.lt.u32.totalorder 4, 8
          %p255 = pneg %p254
          // Predicated region
          $region93: #{tpu_custom_call.1} parent=27 // pred_check
            _
          $region94: #{tpu_custom_call.1} parent=27 // pred_check_branch
            %257 = sbr.rel (%p254) target = $region96
          $region95: #{tpu_custom_call.1} parent=27 // pred_region
            %s272 = sand.u32 4, 7
            %p273 = scmp.eq.s32.totalorder %s272, 0
            %p274 = pneg %p273
            // Predicated region
            $region108: #{tpu_custom_call.1} parent=95 // pred_check
              _
            $region109: #{tpu_custom_call.1} parent=95 // pred_check_branch
              %276 = sbr.rel (%p273) target = $region111
            $region110: #{tpu_custom_call.1} parent=95 // pred_region
              %s277 = sand.u32 4, 7
              %s278 = ssub.s32 4, %s277
              %s279 = scalar_lea.vmem %s4, %s278
              %s280 = ssub.s32 4, %s277
              %s281 = scalar_lea.vmem [#allocation5], %s280
              %s282 = sshllo.u32 0, %s277
              loop: start=0, step=1, limit=1
              $region112: #{tpu_custom_call.1} parent=110 // loop_pre_header
                _
              $region113: #{tpu_custom_call.1} parent=110 // loop_header
                %s284 = sphi 0, %s288
                %p285 = scmp.ge.s32.totalorder %s284, 1
                %s289 = sphi %s279, %s279
                %s290 = sphi %s281, %s281
              $region114: #{tpu_custom_call.1} parent=110 // loop_header_branch
                %287 = sbr.rel (%p285) target = $region118
              $region115: #{tpu_custom_call.1} parent=110 // loop_body
                %v291 = vld [vmem:[%s289] sm:%s282]
                %292 = vst [vmem:[%s290] sm:%s282] %v291
              $region116: #{tpu_custom_call.1} parent=110 // loop_footer
                %s288 = sadd.s32 1, %s284
              $region117: #{tpu_custom_call.1} parent=110 // loop_footer_branch
                %283 = sbr.rel target = $region113
              $region118: #{tpu_custom_call.1} parent=110 // loop_exit
                _
            $region111: #{tpu_custom_call.1} parent=95 // pred_fallthru
              _
          $region96: #{tpu_custom_call.1} parent=27 // pred_fallthru
            _
          // Predicated region
          $region97: #{tpu_custom_call.1} parent=27 // pred_check
            %p258 = pneg %p254
          $region98: #{tpu_custom_call.1} parent=27 // pred_check_branch
            %260 = sbr.rel (%p258) target = $region100
          $region99: #{tpu_custom_call.1} parent=27 // pred_region
            %s261 = sshllo.u32 0, 4
            loop: start=0, step=1, limit=1
            $region101: #{tpu_custom_call.1} parent=99 // loop_pre_header
              _
            $region102: #{tpu_custom_call.1} parent=99 // loop_header
              %s263 = sphi 0, %s267
              %p264 = scmp.ge.s32.totalorder %s263, 1
              %s268 = sphi %s4, %s4
              %s269 = sphi [#allocation5], [#allocation5]
            $region103: #{tpu_custom_call.1} parent=99 // loop_header_branch
              %266 = sbr.rel (%p264) target = $region107
            $region104: #{tpu_custom_call.1} parent=99 // loop_body
              %v270 = vld [vmem:[%s268] sm:%s261]
              %271 = vst [vmem:[%s269] sm:%s261] %v270
            $region105: #{tpu_custom_call.1} parent=99 // loop_footer
              %s267 = sadd.s32 1, %s263
            $region106: #{tpu_custom_call.1} parent=99 // loop_footer_branch
              %262 = sbr.rel target = $region102
            $region107: #{tpu_custom_call.1} parent=99 // loop_exit
              _
          $region100: #{tpu_custom_call.1} parent=27 // pred_fallthru
            _
          // Predicated region
          $region119: #{tpu_custom_call.1} parent=27 // pred_check
            _
          $region120: #{tpu_custom_call.1} parent=27 // pred_check_branch
            %295 = sbr.rel (0) target = $region122
          $region121: #{tpu_custom_call.1} parent=27 // pred_region
            %296 = vsyncadd %s252, 64
          $region122: #{tpu_custom_call.1} parent=27 // pred_fallthru
            _
          %s297 = scalar_lea.sflag [#allocation8], 4
          %p299 = scmp.lt.u32.totalorder 128, 8
          %p300 = pneg %p299
          // Predicated region
          $region123: #{tpu_custom_call.1} parent=27 // pred_check
            _
          $region124: #{tpu_custom_call.1} parent=27 // pred_check_branch
            %302 = sbr.rel (%p299) target = $region126
          $region125: #{tpu_custom_call.1} parent=27 // pred_region
            %s317 = sand.u32 128, 7
            %p318 = scmp.eq.s32.totalorder %s317, 0
            // Predicated region
            $region138: #{tpu_custom_call.1} parent=125 // pred_check
              %p319 = pneg %p318
            $region139: #{tpu_custom_call.1} parent=125 // pred_check_branch
              %321 = sbr.rel (%p319) target = $region141
            $region140: #{tpu_custom_call.1} parent=125 // pred_region
              loop: start=0, step=1, limit=1
              $region142: #{tpu_custom_call.1} parent=140 // loop_pre_header
                _
              $region143: #{tpu_custom_call.1} parent=140 // loop_header
                %s323 = sphi 0, %s327
                %p324 = scmp.ge.s32.totalorder %s323, 1
                %s328 = sphi %s5, %s5
                %s329 = sphi [#allocation6], [#allocation6]
              $region144: #{tpu_custom_call.1} parent=140 // loop_header_branch
                %326 = sbr.rel (%p324) target = $region148
              $region145: #{tpu_custom_call.1} parent=140 // loop_body
                %v330 = vld [vmem:[%s328] sm:$0xff]
                %331 = vst [vmem:[%s329] sm:$0xff] %v330
                %v332 = vld [vmem:[%s328 + $0x8] sm:$0xff]
                %333 = vst [vmem:[%s329 + $0x8] sm:$0xff] %v332
                %v334 = vld [vmem:[%s328 + $0x10] sm:$0xff]
                %335 = vst [vmem:[%s329 + $0x10] sm:$0xff] %v334
                %v336 = vld [vmem:[%s328 + $0x18] sm:$0xff]
                %337 = vst [vmem:[%s329 + $0x18] sm:$0xff] %v336
                %v338 = vld [vmem:[%s328 + $0x20] sm:$0xff]
                %339 = vst [vmem:[%s329 + $0x20] sm:$0xff] %v338
                %v340 = vld [vmem:[%s328 + $0x28] sm:$0xff]
                %341 = vst [vmem:[%s329 + $0x28] sm:$0xff] %v340
                %v342 = vld [vmem:[%s328 + $0x30] sm:$0xff]
                %343 = vst [vmem:[%s329 + $0x30] sm:$0xff] %v342
                %v344 = vld [vmem:[%s328 + $0x38] sm:$0xff]
                %345 = vst [vmem:[%s329 + $0x38] sm:$0xff] %v344
                %v346 = vld [vmem:[%s328 + $0x40] sm:$0xff]
                %347 = vst [vmem:[%s329 + $0x40] sm:$0xff] %v346
                %v348 = vld [vmem:[%s328 + $0x48] sm:$0xff]
                %349 = vst [vmem:[%s329 + $0x48] sm:$0xff] %v348
                %v350 = vld [vmem:[%s328 + $0x50] sm:$0xff]
                %351 = vst [vmem:[%s329 + $0x50] sm:$0xff] %v350
                %v352 = vld [vmem:[%s328 + $0x58] sm:$0xff]
                %353 = vst [vmem:[%s329 + $0x58] sm:$0xff] %v352
                %v354 = vld [vmem:[%s328 + $0x60] sm:$0xff]
                %355 = vst [vmem:[%s329 + $0x60] sm:$0xff] %v354
                %v356 = vld [vmem:[%s328 + $0x68] sm:$0xff]
                %357 = vst [vmem:[%s329 + $0x68] sm:$0xff] %v356
                %v358 = vld [vmem:[%s328 + $0x70] sm:$0xff]
                %359 = vst [vmem:[%s329 + $0x70] sm:$0xff] %v358
                %v360 = vld [vmem:[%s328 + $0x78] sm:$0xff]
                %361 = vst [vmem:[%s329 + $0x78] sm:$0xff] %v360
              $region146: #{tpu_custom_call.1} parent=140 // loop_footer
                %s327 = sadd.s32 1, %s323
              $region147: #{tpu_custom_call.1} parent=140 // loop_footer_branch
                %322 = sbr.rel target = $region143
              $region148: #{tpu_custom_call.1} parent=140 // loop_exit
                _
            $region141: #{tpu_custom_call.1} parent=125 // pred_fallthru
              _
            %p362 = pneg %p318
            // Predicated region
            $region149: #{tpu_custom_call.1} parent=125 // pred_check
              _
            $region150: #{tpu_custom_call.1} parent=125 // pred_check_branch
              %364 = sbr.rel (%p318) target = $region152
            $region151: #{tpu_custom_call.1} parent=125 // pred_region
              %s365 = sand.u32 128, 7
            $region152: #{tpu_custom_call.1} parent=125 // pred_fallthru
              _
          $region126: #{tpu_custom_call.1} parent=27 // pred_fallthru
            _
          // Predicated region
          $region127: #{tpu_custom_call.1} parent=27 // pred_check
            %p303 = pneg %p299
          $region128: #{tpu_custom_call.1} parent=27 // pred_check_branch
            %305 = sbr.rel (%p303) target = $region130
          $region129: #{tpu_custom_call.1} parent=27 // pred_region
            %s306 = sshllo.u32 0, 128
            loop: start=0, step=1, limit=1
            $region131: #{tpu_custom_call.1} parent=129 // loop_pre_header
              _
            $region132: #{tpu_custom_call.1} parent=129 // loop_header
              %s308 = sphi 0, %s312
              %p309 = scmp.ge.s32.totalorder %s308, 1
              %s313 = sphi %s5, %s5
              %s314 = sphi [#allocation6], [#allocation6]
            $region133: #{tpu_custom_call.1} parent=129 // loop_header_branch
              %311 = sbr.rel (%p309) target = $region137
            $region134: #{tpu_custom_call.1} parent=129 // loop_body
              %v315 = vld [vmem:[%s313] sm:%s306]
              %316 = vst [vmem:[%s314] sm:%s306] %v315
            $region135: #{tpu_custom_call.1} parent=129 // loop_footer
              %s312 = sadd.s32 1, %s308
            $region136: #{tpu_custom_call.1} parent=129 // loop_footer_branch
              %307 = sbr.rel target = $region132
            $region137: #{tpu_custom_call.1} parent=129 // loop_exit
              _
          $region130: #{tpu_custom_call.1} parent=27 // pred_fallthru
            _
          // Predicated region
          $region153: #{tpu_custom_call.1} parent=27 // pred_check
            _
          $region154: #{tpu_custom_call.1} parent=27 // pred_check_branch
            %368 = sbr.rel (0) target = $region156
          $region155: #{tpu_custom_call.1} parent=27 // pred_region
            %369 = vsyncadd %s297, 2048
          $region156: #{tpu_custom_call.1} parent=27 // pred_fallthru
            _
          %s370 = scalar_lea.sflag [#allocation8], 5
          %p372 = scmp.lt.u32.totalorder 1, 8
          %p373 = pneg %p372
          // Predicated region
          $region157: #{tpu_custom_call.1} parent=27 // pred_check
            _
          $region158: #{tpu_custom_call.1} parent=27 // pred_check_branch
            %375 = sbr.rel (%p372) target = $region160
          $region159: #{tpu_custom_call.1} parent=27 // pred_region
            %s390 = sand.u32 1, 7
            %p391 = scmp.eq.s32.totalorder %s390, 0
            %p392 = pneg %p391
            // Predicated region
            $region172: #{tpu_custom_call.1} parent=159 // pred_check
              _
            $region173: #{tpu_custom_call.1} parent=159 // pred_check_branch
              %394 = sbr.rel (%p391) target = $region175
            $region174: #{tpu_custom_call.1} parent=159 // pred_region
              %s395 = sand.u32 1, 7
              %s396 = ssub.s32 1, %s395
              %s397 = scalar_lea.vmem %s6, %s396
              %s398 = ssub.s32 1, %s395
              %s399 = scalar_lea.vmem [#allocation7], %s398
              %s400 = sshllo.u32 0, %s395
              loop: start=0, step=1, limit=1
              $region176: #{tpu_custom_call.1} parent=174 // loop_pre_header
                _
              $region177: #{tpu_custom_call.1} parent=174 // loop_header
                %s402 = sphi 0, %s406
                %p403 = scmp.ge.s32.totalorder %s402, 1
                %s407 = sphi %s397, %s397
                %s408 = sphi %s399, %s399
              $region178: #{tpu_custom_call.1} parent=174 // loop_header_branch
                %405 = sbr.rel (%p403) target = $region182
              $region179: #{tpu_custom_call.1} parent=174 // loop_body
                %v409 = vld [vmem:[%s407] sm:%s400]
                %410 = vst [vmem:[%s408] sm:%s400] %v409
              $region180: #{tpu_custom_call.1} parent=174 // loop_footer
                %s406 = sadd.s32 1, %s402
              $region181: #{tpu_custom_call.1} parent=174 // loop_footer_branch
                %401 = sbr.rel target = $region177
              $region182: #{tpu_custom_call.1} parent=174 // loop_exit
                _
            $region175: #{tpu_custom_call.1} parent=159 // pred_fallthru
              _
          $region160: #{tpu_custom_call.1} parent=27 // pred_fallthru
            _
          // Predicated region
          $region161: #{tpu_custom_call.1} parent=27 // pred_check
            %p376 = pneg %p372
          $region162: #{tpu_custom_call.1} parent=27 // pred_check_branch
            %378 = sbr.rel (%p376) target = $region164
          $region163: #{tpu_custom_call.1} parent=27 // pred_region
            %s379 = sshllo.u32 0, 1
            loop: start=0, step=1, limit=1
            $region165: #{tpu_custom_call.1} parent=163 // loop_pre_header
              _
            $region166: #{tpu_custom_call.1} parent=163 // loop_header
              %s381 = sphi 0, %s385
              %p382 = scmp.ge.s32.totalorder %s381, 1
              %s386 = sphi %s6, %s6
              %s387 = sphi [#allocation7], [#allocation7]
            $region167: #{tpu_custom_call.1} parent=163 // loop_header_branch
              %384 = sbr.rel (%p382) target = $region171
            $region168: #{tpu_custom_call.1} parent=163 // loop_body
              %v388 = vld [vmem:[%s386] sm:%s379]
              %389 = vst [vmem:[%s387] sm:%s379] %v388
            $region169: #{tpu_custom_call.1} parent=163 // loop_footer
              %s385 = sadd.s32 1, %s381
            $region170: #{tpu_custom_call.1} parent=163 // loop_footer_branch
              %380 = sbr.rel target = $region166
            $region171: #{tpu_custom_call.1} parent=163 // loop_exit
              _
          $region164: #{tpu_custom_call.1} parent=27 // pred_fallthru
            _
          // Predicated region
          $region183: #{tpu_custom_call.1} parent=27 // pred_check
            _
          $region184: #{tpu_custom_call.1} parent=27 // pred_check_branch
            %413 = sbr.rel (0) target = $region186
          $region185: #{tpu_custom_call.1} parent=27 // pred_region
            %414 = vsyncadd %s370, 16
          $region186: #{tpu_custom_call.1} parent=27 // pred_fallthru
            _
          %s415 = smul.u32 4, 1
          %s416 = smul.u32 %s415, 2
          %s417 = sshll.u32 %s416, 4
          %418 = dma.done [#allocation8], %s417
          %s419 = smul.u32 1, 2
          %s420 = sshll.u32 %s419, 4
          %421 = dma.done %s171, %s420
          %s422 = smul.u32 4, 2
          %s423 = smul.u32 %s422, 32
          %s424 = smul.u32 %s423, 2
          %s425 = sshll.u32 %s424, 4
          %426 = dma.done %s216, %s425
          %s427 = smul.u32 2, 1
          %s428 = smul.u32 %s427, 2
          %s429 = sshll.u32 %s428, 4
          %430 = dma.done %s252, %s429
          %s431 = smul.u32 4, 32
          %s432 = smul.u32 %s431, 1
          %s433 = sshll.u32 %s432, 4
          %434 = dma.done %s297, %s433
          %s435 = smul.u32 1, 1
          %s436 = sshll.u32 %s435, 4
          %437 = dma.done %s370, %s436
        $region28: #{tpu_custom_call.1} parent=23 // pred_fallthru
          _
        %v438 = vld [vmem:[%s121] sm:$0xff]
        %v439 = vld [vmem:[%s121 + $0x8] sm:$0xff]
        %v440 = vld [vmem:[%s121 + $0x10] sm:$0xff]
        %v441 = vld [vmem:[%s121 + $0x18] sm:$0xff]
        %v442 = vld [vmem:[%s121 + $0x20] sm:$0xff]
        %v443 = vld [vmem:[%s121 + $0x28] sm:$0xff]
        %v444 = vld [vmem:[%s121 + $0x30] sm:$0xff]
        %v445 = vld [vmem:[%s121 + $0x38] sm:$0xff]
        %v446 = vld [vmem:[%s121 + $0x40] sm:$0xff]
        %v447 = vld [vmem:[%s121 + $0x48] sm:$0xff]
        %v448 = vld [vmem:[%s121 + $0x50] sm:$0xff]
        %v449 = vld [vmem:[%s121 + $0x58] sm:$0xff]
        %v450 = vld [vmem:[%s121 + $0x60] sm:$0xff]
        %v451 = vld [vmem:[%s121 + $0x68] sm:$0xff]
        %v452 = vld [vmem:[%s121 + $0x70] sm:$0xff]
        %v453 = vld [vmem:[%s121 + $0x78] sm:$0xff]
        %v454 = vpack.c.bf16 %v439, %v438
        %v455 = vpack.c.bf16 %v441, %v440
        %v456 = vpack.c.bf16 %v443, %v442
        %v457 = vpack.c.bf16 %v445, %v444
        %v458 = vpack.c.bf16 %v447, %v446
        %v459 = vpack.c.bf16 %v449, %v448
        %v460 = vpack.c.bf16 %v451, %v450
        %v461 = vpack.c.bf16 %v453, %v452
        %v462 = vld [vmem:[#allocation2] sm:$0xff]
        %v463 = vld [vmem:[#allocation3] sm:$0x3]
        %v465 = vlaneseq
        %v466 = vshrl.u32 %v465, 7
        %v467 = vsub.s32 0, %v466
        %v468 = vrot.slane %v463, %v467
        %v469 = vlaneseq
        %v470 = vshrl.u32 %v469, 7
        %v471 = vsub.s32 1, %v470
        %v472 = vrot.slane %v463, %v471
        %v476 = vunpack.c.l.b16 %v462
        %v477 = vunpack.c.h.b16 %v462
        %v478 = vpack.c.b16 %v476, %v476
        %v479 = vpack.c.b16 %v477, %v477
        %vm480 = vcmask 64512
        %v482 = vsel %vm480, %v454, 0
        %v485 = vsel %vm480, %v455, 0
        %v488 = vsel %vm480, %v456, 0
        %v491 = vsel %vm480, %v457, 0
        %v494 = vsel %vm480, %v458, 0
        %v497 = vsel %vm480, %v459, 0
        %v500 = vsel %vm480, %v460, 0
        %v503 = vsel %vm480, %v461, 0
        %vm505 = vcmask 1043456
        %v507 = vsel %vm505, %v478, 0
        %v510 = vsel %vm505, %v479, 0
        %512 = vmatprep.subr.bf16.mxu0 %v510
        %513 = vmatpush1.bf16.msra.mxu0 %v507
        %514 = vmatprep.subr.bf16.mxu0 0
        %515 = vmatpush1.bf16.msra.mxu0 0
        %516 = vmatprep.subr.bf16.mxu0 0
        %517 = vmatpush1.bf16.msra.mxu0 0
        %518 = vmatprep.subr.bf16.mxu0 0
        %519 = vmatpush1.bf16.msra.mxu0 0
        %520 = vmatprep.subr.bf16.mxu0 0
        %521 = vmatpush1.bf16.msra.mxu0 0
        %522 = vmatprep.subr.bf16.mxu0 0
        %523 = vmatpush1.bf16.msra.mxu0 0
        %524 = vmatprep.subr.bf16.mxu0 0
        %525 = vmatpush1.bf16.msra.mxu0 0
        %526 = vmatprep.subr.bf16.mxu0 0
        %527 = vmatpush1.bf16.msra.mxu0 0
        %528 = vmatprep.subr.bf16.mxu0 0
        %529 = vmatpush1.bf16.msra.mxu0 0
        %530 = vmatprep.subr.bf16.mxu0 0
        %531 = vmatpush1.bf16.msra.mxu0 0
        %532 = vmatprep.subr.bf16.mxu0 0
        %533 = vmatpush1.bf16.msra.mxu0 0
        %534 = vmatprep.subr.bf16.mxu0 0
        %535 = vmatpush1.bf16.msra.mxu0 0
        %536 = vmatprep.subr.bf16.mxu0 0
        %537 = vmatpush1.bf16.msra.mxu0 0
        %538 = vmatprep.subr.bf16.mxu0 0
        %539 = vmatpush1.bf16.msra.mxu0 0
        %540 = vmatprep.subr.bf16.mxu0 0
        %541 = vmatpush1.bf16.msra.mxu0 0
        %542 = vmatprep.subr.bf16.mxu0 0
        %543 = vmatpush1.bf16.msra.mxu0 0
        %544 = vmatprep.mubr.bf16.mxu0 0
        %545 = vmatmul.mubr.bf16.gmra.mrb[0].mxu0 %v482
        %v546 = vpop.f32.mrb[0].mxu0
        %v547 = vadd.f32 %v468, %v546
        %v548 = vpop.f32.mrb[0].mxu0
        %v549 = vadd.f32 %v472, %v548
        %v550 = vpop.f32.mrb[0].mxu0
        %v551 = vadd.f32 %v468, %v550
        %v552 = vpop.f32.mrb[0].mxu0
        %v553 = vadd.f32 %v472, %v552
        %554 = vmatprep.mubr.bf16.mxu0 0
        %555 = vmatmul.mubr.bf16.gmra.mrb[0].mxu0 %v485
        %v556 = vpop.f32.mrb[0].mxu0
        %v557 = vadd.f32 %v468, %v556
        %v558 = vpop.f32.mrb[0].mxu0
        %v559 = vadd.f32 %v472, %v558
        %v560 = vpop.f32.mrb[0].mxu0
        %v561 = vadd.f32 %v468, %v560
        %v562 = vpop.f32.mrb[0].mxu0
        %v563 = vadd.f32 %v472, %v562
        %564 = vmatprep.mubr.bf16.mxu0 0
        %565 = vmatmul.mubr.bf16.gmra.mrb[0].mxu0 %v488
        %v566 = vpop.f32.mrb[0].mxu0
        %v567 = vadd.f32 %v468, %v566
        %v568 = vpop.f32.mrb[0].mxu0
        %v569 = vadd.f32 %v472, %v568
        %v570 = vpop.f32.mrb[0].mxu0
        %v571 = vadd.f32 %v468, %v570
        %v572 = vpop.f32.mrb[0].mxu0
        %v573 = vadd.f32 %v472, %v572
        %574 = vmatprep.mubr.bf16.mxu0 0
        %575 = vmatmul.mubr.bf16.gmra.mrb[0].mxu0 %v491
        %v576 = vpop.f32.mrb[0].mxu0
        %v577 = vadd.f32 %v468, %v576
        %v578 = vpop.f32.mrb[0].mxu0
        %v579 = vadd.f32 %v472, %v578
        %v580 = vpop.f32.mrb[0].mxu0
        %v581 = vadd.f32 %v468, %v580
        %v582 = vpop.f32.mrb[0].mxu0
        %v583 = vadd.f32 %v472, %v582
        %584 = vmatprep.mubr.bf16.mxu0 0
        %585 = vmatmul.mubr.bf16.gmra.mrb[0].mxu0 %v494
        %v586 = vpop.f32.mrb[0].mxu0
        %v587 = vadd.f32 %v468, %v586
        %v588 = vpop.f32.mrb[0].mxu0
        %v589 = vadd.f32 %v472, %v588
        %v590 = vpop.f32.mrb[0].mxu0
        %v591 = vadd.f32 %v468, %v590
        %v592 = vpop.f32.mrb[0].mxu0
        %v593 = vadd.f32 %v472, %v592
        %594 = vmatprep.mubr.bf16.mxu0 0
        %595 = vmatmul.mubr.bf16.gmra.mrb[0].mxu0 %v497
        %v596 = vpop.f32.mrb[0].mxu0
        %v597 = vadd.f32 %v468, %v596
        %v598 = vpop.f32.mrb[0].mxu0
        %v599 = vadd.f32 %v472, %v598
        %v600 = vpop.f32.mrb[0].mxu0
        %v601 = vadd.f32 %v468, %v600
        %v602 = vpop.f32.mrb[0].mxu0
        %v603 = vadd.f32 %v472, %v602
        %604 = vmatprep.mubr.bf16.mxu0 0
        %605 = vmatmul.mubr.bf16.gmra.mrb[0].mxu0 %v500
        %v606 = vpop.f32.mrb[0].mxu0
        %v607 = vadd.f32 %v468, %v606
        %v608 = vpop.f32.mrb[0].mxu0
        %v609 = vadd.f32 %v472, %v608
        %v610 = vpop.f32.mrb[0].mxu0
        %v611 = vadd.f32 %v468, %v610
        %v612 = vpop.f32.mrb[0].mxu0
        %v613 = vadd.f32 %v472, %v612
        %614 = vmatprep.mubr.bf16.mxu0 0
        %615 = vmatmul.mubr.bf16.gmra.mrb[0].mxu0 %v503
        %v616 = vpop.f32.mrb[0].mxu0
        %v617 = vadd.f32 %v468, %v616
        %v618 = vpop.f32.mrb[0].mxu0
        %v619 = vadd.f32 %v472, %v618
        %v620 = vpop.f32.mrb[0].mxu0
        %v621 = vadd.f32 %v468, %v620
        %v622 = vpop.f32.mrb[0].mxu0
        %v623 = vadd.f32 %v472, %v622
        %624 = vdwg.mxu0
        %v625 = vmax.f32 %v547, 0.0
        %v626 = vmax.f32 %v549, 0.0
        %v627 = vmax.f32 %v551, 0.0
        %v628 = vmax.f32 %v553, 0.0
        %v629 = vmax.f32 %v557, 0.0
        %v630 = vmax.f32 %v559, 0.0
        %v631 = vmax.f32 %v561, 0.0
        %v632 = vmax.f32 %v563, 0.0
        %v633 = vmax.f32 %v567, 0.0
        %v634 = vmax.f32 %v569, 0.0
        %v635 = vmax.f32 %v571, 0.0
        %v636 = vmax.f32 %v573, 0.0
        %v637 = vmax.f32 %v577, 0.0
        %v638 = vmax.f32 %v579, 0.0
        %v639 = vmax.f32 %v581, 0.0
        %v640 = vmax.f32 %v583, 0.0
        %v641 = vmax.f32 %v587, 0.0
        %v642 = vmax.f32 %v589, 0.0
        %v643 = vmax.f32 %v591, 0.0
        %v644 = vmax.f32 %v593, 0.0
        %v645 = vmax.f32 %v597, 0.0
        %v646 = vmax.f32 %v599, 0.0
        %v647 = vmax.f32 %v601, 0.0
        %v648 = vmax.f32 %v603, 0.0
        %v649 = vmax.f32 %v607, 0.0
        %v650 = vmax.f32 %v609, 0.0
        %v651 = vmax.f32 %v611, 0.0
        %v652 = vmax.f32 %v613, 0.0
        %v653 = vmax.f32 %v617, 0.0
        %v654 = vmax.f32 %v619, 0.0
        %v655 = vmax.f32 %v621, 0.0
        %v656 = vmax.f32 %v623, 0.0
        %v657 = vpack.c.bf16 %v627, %v625
        %v658 = vpack.c.bf16 %v628, %v626
        %v659 = vpack.c.bf16 %v631, %v629
        %v660 = vpack.c.bf16 %v632, %v630
        %v661 = vpack.c.bf16 %v635, %v633
        %v662 = vpack.c.bf16 %v636, %v634
        %v663 = vpack.c.bf16 %v639, %v637
        %v664 = vpack.c.bf16 %v640, %v638
        %v665 = vpack.c.bf16 %v643, %v641
        %v666 = vpack.c.bf16 %v644, %v642
        %v667 = vpack.c.bf16 %v647, %v645
        %v668 = vpack.c.bf16 %v648, %v646
        %v669 = vpack.c.bf16 %v651, %v649
        %v670 = vpack.c.bf16 %v652, %v650
        %v671 = vpack.c.bf16 %v655, %v653
        %v672 = vpack.c.bf16 %v656, %v654
        %v673 = vld [vmem:[#allocation4] sm:$0xff]
        %v674 = vld [vmem:[#allocation4 + $0x8] sm:$0xff]
        %v675 = vld [vmem:[#allocation4 + $0x10] sm:$0xff]
        %v676 = vld [vmem:[#allocation4 + $0x18] sm:$0xff]
        %v677 = vld [vmem:[#allocation4 + $0x20] sm:$0xff]
        %v678 = vld [vmem:[#allocation4 + $0x28] sm:$0xff]
        %v679 = vld [vmem:[#allocation4 + $0x30] sm:$0xff]
        %v680 = vld [vmem:[#allocation4 + $0x38] sm:$0xff]
        %v681 = vld [vmem:[#allocation4 + $0x40] sm:$0xff]
        %v682 = vld [vmem:[#allocation4 + $0x48] sm:$0xff]
        %v683 = vld [vmem:[#allocation4 + $0x50] sm:$0xff]
        %v684 = vld [vmem:[#allocation4 + $0x58] sm:$0xff]
        %v685 = vld [vmem:[#allocation4 + $0x60] sm:$0xff]
        %v686 = vld [vmem:[#allocation4 + $0x68] sm:$0xff]
        %v687 = vld [vmem:[#allocation4 + $0x70] sm:$0xff]
        %v688 = vld [vmem:[#allocation4 + $0x78] sm:$0xff]
        %v689 = vld [vmem:[#allocation4 + $0x80] sm:$0xff]
        %v690 = vld [vmem:[#allocation4 + $0x88] sm:$0xff]
        %v691 = vld [vmem:[#allocation4 + $0x90] sm:$0xff]
        %v692 = vld [vmem:[#allocation4 + $0x98] sm:$0xff]
        %v693 = vld [vmem:[#allocation4 + $0xa0] sm:$0xff]
        %v694 = vld [vmem:[#allocation4 + $0xa8] sm:$0xff]
        %v695 = vld [vmem:[#allocation4 + $0xb0] sm:$0xff]
        %v696 = vld [vmem:[#allocation4 + $0xb8] sm:$0xff]
        %v697 = vld [vmem:[#allocation4 + $0xc0] sm:$0xff]
        %v698 = vld [vmem:[#allocation4 + $0xc8] sm:$0xff]
        %v699 = vld [vmem:[#allocation4 + $0xd0] sm:$0xff]
        %v700 = vld [vmem:[#allocation4 + $0xd8] sm:$0xff]
        %v701 = vld [vmem:[#allocation4 + $0xe0] sm:$0xff]
        %v702 = vld [vmem:[#allocation4 + $0xe8] sm:$0xff]
        %v703 = vld [vmem:[#allocation4 + $0xf0] sm:$0xff]
        %v704 = vld [vmem:[#allocation4 + $0xf8] sm:$0xff]
        %v705 = vld [vmem:[#allocation5] sm:$0x3]
        %v707 = vlaneseq
        %v708 = vshrl.u32 %v707, 7
        %v709 = vsub.s32 0, %v708
        %v710 = vrot.slane %v705, %v709
        %v711 = vlaneseq
        %v712 = vshrl.u32 %v711, 7
        %v713 = vsub.s32 1, %v712
        %v714 = vrot.slane %v705, %v713
        %717 = vmatprep.subr.bf16.mxu0 %v674
        %718 = vmatpush1.bf16.msra.mxu0 %v673
        %719 = vmatprep.subr.bf16.mxu0 %v676
        %720 = vmatpush1.bf16.msra.mxu0 %v675
        %721 = vmatprep.subr.bf16.mxu0 %v678
        %722 = vmatpush1.bf16.msra.mxu0 %v677
        %723 = vmatprep.subr.bf16.mxu0 %v680
        %724 = vmatpush1.bf16.msra.mxu0 %v679
        %725 = vmatprep.subr.bf16.mxu0 %v682
        %726 = vmatpush1.bf16.msra.mxu0 %v681
        %727 = vmatprep.subr.bf16.mxu0 %v684
        %728 = vmatpush1.bf16.msra.mxu0 %v683
        %729 = vmatprep.subr.bf16.mxu0 %v686
        %730 = vmatpush1.bf16.msra.mxu0 %v685
        %731 = vmatprep.subr.bf16.mxu0 %v688
        %732 = vmatpush1.bf16.msra.mxu0 %v687
        %733 = vmatprep.subr.bf16.mxu0 %v690
        %734 = vmatpush1.bf16.msra.mxu0 %v689
        %735 = vmatprep.subr.bf16.mxu0 %v692
        %736 = vmatpush1.bf16.msra.mxu0 %v691
        %737 = vmatprep.subr.bf16.mxu0 %v694
        %738 = vmatpush1.bf16.msra.mxu0 %v693
        %739 = vmatprep.subr.bf16.mxu0 %v696
        %740 = vmatpush1.bf16.msra.mxu0 %v695
        %741 = vmatprep.subr.bf16.mxu0 %v698
        %742 = vmatpush1.bf16.msra.mxu0 %v697
        %743 = vmatprep.subr.bf16.mxu0 %v700
        %744 = vmatpush1.bf16.msra.mxu0 %v699
        %745 = vmatprep.subr.bf16.mxu0 %v702
        %746 = vmatpush1.bf16.msra.mxu0 %v701
        %747 = vmatprep.subr.bf16.mxu0 %v704
        %748 = vmatpush1.bf16.msra.mxu0 %v703
        %749 = vmatprep.mubr.bf16.mxu0 %v658
        %750 = vmatmul.mubr.bf16.gmra.mrb[0].mxu0 %v657
        %v751 = vpop.f32.mrb[0].mxu0
        %v752 = vadd.f32 %v710, %v751
        %v753 = vpop.f32.mrb[0].mxu0
        %v754 = vadd.f32 %v714, %v753
        %v755 = vpop.f32.mrb[0].mxu0
        %v756 = vadd.f32 %v710, %v755
        %v757 = vpop.f32.mrb[0].mxu0
        %v758 = vadd.f32 %v714, %v757
        %759 = vmatprep.mubr.bf16.mxu0 %v660
        %760 = vmatmul.mubr.bf16.gmra.mrb[0].mxu0 %v659
        %v761 = vpop.f32.mrb[0].mxu0
        %v762 = vadd.f32 %v710, %v761
        %v763 = vpop.f32.mrb[0].mxu0
        %v764 = vadd.f32 %v714, %v763
        %v765 = vpop.f32.mrb[0].mxu0
        %v766 = vadd.f32 %v710, %v765
        %v767 = vpop.f32.mrb[0].mxu0
        %v768 = vadd.f32 %v714, %v767
        %769 = vmatprep.mubr.bf16.mxu0 %v662
        %770 = vmatmul.mubr.bf16.gmra.mrb[0].mxu0 %v661
        %v771 = vpop.f32.mrb[0].mxu0
        %v772 = vadd.f32 %v710, %v771
        %v773 = vpop.f32.mrb[0].mxu0
        %v774 = vadd.f32 %v714, %v773
        %v775 = vpop.f32.mrb[0].mxu0
        %v776 = vadd.f32 %v710, %v775
        %v777 = vpop.f32.mrb[0].mxu0
        %v778 = vadd.f32 %v714, %v777
        %779 = vmatprep.mubr.bf16.mxu0 %v664
        %780 = vmatmul.mubr.bf16.gmra.mrb[0].mxu0 %v663
        %v781 = vpop.f32.mrb[0].mxu0
        %v782 = vadd.f32 %v710, %v781
        %v783 = vpop.f32.mrb[0].mxu0
        %v784 = vadd.f32 %v714, %v783
        %v785 = vpop.f32.mrb[0].mxu0
        %v786 = vadd.f32 %v710, %v785
        %v787 = vpop.f32.mrb[0].mxu0
        %v788 = vadd.f32 %v714, %v787
        %789 = vmatprep.mubr.bf16.mxu0 %v666
        %790 = vmatmul.mubr.bf16.gmra.mrb[0].mxu0 %v665
        %v791 = vpop.f32.mrb[0].mxu0
        %v792 = vadd.f32 %v710, %v791
        %v793 = vpop.f32.mrb[0].mxu0
        %v794 = vadd.f32 %v714, %v793
        %v795 = vpop.f32.mrb[0].mxu0
        %v796 = vadd.f32 %v710, %v795
        %v797 = vpop.f32.mrb[0].mxu0
        %v798 = vadd.f32 %v714, %v797
        %799 = vmatprep.mubr.bf16.mxu0 %v668
        %800 = vmatmul.mubr.bf16.gmra.mrb[0].mxu0 %v667
        %v801 = vpop.f32.mrb[0].mxu0
        %v802 = vadd.f32 %v710, %v801
        %v803 = vpop.f32.mrb[0].mxu0
        %v804 = vadd.f32 %v714, %v803
        %v805 = vpop.f32.mrb[0].mxu0
        %v806 = vadd.f32 %v710, %v805
        %v807 = vpop.f32.mrb[0].mxu0
        %v808 = vadd.f32 %v714, %v807
        %809 = vmatprep.mubr.bf16.mxu0 %v670
        %810 = vmatmul.mubr.bf16.gmra.mrb[0].mxu0 %v669
        %v811 = vpop.f32.mrb[0].mxu0
        %v812 = vadd.f32 %v710, %v811
        %v813 = vpop.f32.mrb[0].mxu0
        %v814 = vadd.f32 %v714, %v813
        %v815 = vpop.f32.mrb[0].mxu0
        %v816 = vadd.f32 %v710, %v815
        %v817 = vpop.f32.mrb[0].mxu0
        %v818 = vadd.f32 %v714, %v817
        %819 = vmatprep.mubr.bf16.mxu0 %v672
        %820 = vmatmul.mubr.bf16.gmra.mrb[0].mxu0 %v671
        %v821 = vpop.f32.mrb[0].mxu0
        %v822 = vadd.f32 %v710, %v821
        %v823 = vpop.f32.mrb[0].mxu0
        %v824 = vadd.f32 %v714, %v823
        %v825 = vpop.f32.mrb[0].mxu0
        %v826 = vadd.f32 %v710, %v825
        %v827 = vpop.f32.mrb[0].mxu0
        %v828 = vadd.f32 %v714, %v827
        %829 = vdwg.mxu0
        %v830 = vmax.f32 %v752, 0.0
        %v831 = vmax.f32 %v754, 0.0
        %v832 = vmax.f32 %v756, 0.0
        %v833 = vmax.f32 %v758, 0.0
        %v834 = vmax.f32 %v762, 0.0
        %v835 = vmax.f32 %v764, 0.0
        %v836 = vmax.f32 %v766, 0.0
        %v837 = vmax.f32 %v768, 0.0
        %v838 = vmax.f32 %v772, 0.0
        %v839 = vmax.f32 %v774, 0.0
        %v840 = vmax.f32 %v776, 0.0
        %v841 = vmax.f32 %v778, 0.0
        %v842 = vmax.f32 %v782, 0.0
        %v843 = vmax.f32 %v784, 0.0
        %v844 = vmax.f32 %v786, 0.0
        %v845 = vmax.f32 %v788, 0.0
        %v846 = vmax.f32 %v792, 0.0
        %v847 = vmax.f32 %v794, 0.0
        %v848 = vmax.f32 %v796, 0.0
        %v849 = vmax.f32 %v798, 0.0
        %v850 = vmax.f32 %v802, 0.0
        %v851 = vmax.f32 %v804, 0.0
        %v852 = vmax.f32 %v806, 0.0
        %v853 = vmax.f32 %v808, 0.0
        %v854 = vmax.f32 %v812, 0.0
        %v855 = vmax.f32 %v814, 0.0
        %v856 = vmax.f32 %v816, 0.0
        %v857 = vmax.f32 %v818, 0.0
        %v858 = vmax.f32 %v822, 0.0
        %v859 = vmax.f32 %v824, 0.0
        %v860 = vmax.f32 %v826, 0.0
        %v861 = vmax.f32 %v828, 0.0
        %v862 = vpack.c.bf16 %v832, %v830
        %v863 = vpack.c.bf16 %v833, %v831
        %v864 = vpack.c.bf16 %v836, %v834
        %v865 = vpack.c.bf16 %v837, %v835
        %v866 = vpack.c.bf16 %v840, %v838
        %v867 = vpack.c.bf16 %v841, %v839
        %v868 = vpack.c.bf16 %v844, %v842
        %v869 = vpack.c.bf16 %v845, %v843
        %v870 = vpack.c.bf16 %v848, %v846
        %v871 = vpack.c.bf16 %v849, %v847
        %v872 = vpack.c.bf16 %v852, %v850
        %v873 = vpack.c.bf16 %v853, %v851
        %v874 = vpack.c.bf16 %v856, %v854
        %v875 = vpack.c.bf16 %v857, %v855
        %v876 = vpack.c.bf16 %v860, %v858
        %v877 = vpack.c.bf16 %v861, %v859
        %s878 = scalar_lea.vmem [#allocation4], 256
        %v879 = vld [vmem:[%s878] sm:$0xff]
        %v880 = vld [vmem:[%s878 + $0x8] sm:$0xff]
        %v881 = vld [vmem:[%s878 + $0x10] sm:$0xff]
        %v882 = vld [vmem:[%s878 + $0x18] sm:$0xff]
        %v883 = vld [vmem:[%s878 + $0x20] sm:$0xff]
        %v884 = vld [vmem:[%s878 + $0x28] sm:$0xff]
        %v885 = vld [vmem:[%s878 + $0x30] sm:$0xff]
        %v886 = vld [vmem:[%s878 + $0x38] sm:$0xff]
        %v887 = vld [vmem:[%s878 + $0x40] sm:$0xff]
        %v888 = vld [vmem:[%s878 + $0x48] sm:$0xff]
        %v889 = vld [vmem:[%s878 + $0x50] sm:$0xff]
        %v890 = vld [vmem:[%s878 + $0x58] sm:$0xff]
        %v891 = vld [vmem:[%s878 + $0x60] sm:$0xff]
        %v892 = vld [vmem:[%s878 + $0x68] sm:$0xff]
        %v893 = vld [vmem:[%s878 + $0x70] sm:$0xff]
        %v894 = vld [vmem:[%s878 + $0x78] sm:$0xff]
        %v895 = vld [vmem:[%s878 + $0x80] sm:$0xff]
        %v896 = vld [vmem:[%s878 + $0x88] sm:$0xff]
        %v897 = vld [vmem:[%s878 + $0x90] sm:$0xff]
        %v898 = vld [vmem:[%s878 + $0x98] sm:$0xff]
        %v899 = vld [vmem:[%s878 + $0xa0] sm:$0xff]
        %v900 = vld [vmem:[%s878 + $0xa8] sm:$0xff]
        %v901 = vld [vmem:[%s878 + $0xb0] sm:$0xff]
        %v902 = vld [vmem:[%s878 + $0xb8] sm:$0xff]
        %v903 = vld [vmem:[%s878 + $0xc0] sm:$0xff]
        %v904 = vld [vmem:[%s878 + $0xc8] sm:$0xff]
        %v905 = vld [vmem:[%s878 + $0xd0] sm:$0xff]
        %v906 = vld [vmem:[%s878 + $0xd8] sm:$0xff]
        %v907 = vld [vmem:[%s878 + $0xe0] sm:$0xff]
        %v908 = vld [vmem:[%s878 + $0xe8] sm:$0xff]
        %v909 = vld [vmem:[%s878 + $0xf0] sm:$0xff]
        %v910 = vld [vmem:[%s878 + $0xf8] sm:$0xff]
        %s911 = scalar_lea.vmem [#allocation5], 2
        %v912 = vld [vmem:[%s911] sm:$0x3]
        %v914 = vlaneseq
        %v915 = vshrl.u32 %v914, 7
        %v916 = vsub.s32 0, %v915
        %v917 = vrot.slane %v912, %v916
        %v918 = vlaneseq
        %v919 = vshrl.u32 %v918, 7
        %v920 = vsub.s32 1, %v919
        %v921 = vrot.slane %v912, %v920
        %924 = vmatprep.subr.bf16.mxu0 %v880
        %925 = vmatpush1.bf16.msra.mxu0 %v879
        %926 = vmatprep.subr.bf16.mxu0 %v882
        %927 = vmatpush1.bf16.msra.mxu0 %v881
        %928 = vmatprep.subr.bf16.mxu0 %v884
        %929 = vmatpush1.bf16.msra.mxu0 %v883
        %930 = vmatprep.subr.bf16.mxu0 %v886
        %931 = vmatpush1.bf16.msra.mxu0 %v885
        %932 = vmatprep.subr.bf16.mxu0 %v888
        %933 = vmatpush1.bf16.msra.mxu0 %v887
        %934 = vmatprep.subr.bf16.mxu0 %v890
        %935 = vmatpush1.bf16.msra.mxu0 %v889
        %936 = vmatprep.subr.bf16.mxu0 %v892
        %937 = vmatpush1.bf16.msra.mxu0 %v891
        %938 = vmatprep.subr.bf16.mxu0 %v894
        %939 = vmatpush1.bf16.msra.mxu0 %v893
        %940 = vmatprep.subr.bf16.mxu0 %v896
        %941 = vmatpush1.bf16.msra.mxu0 %v895
        %942 = vmatprep.subr.bf16.mxu0 %v898
        %943 = vmatpush1.bf16.msra.mxu0 %v897
        %944 = vmatprep.subr.bf16.mxu0 %v900
        %945 = vmatpush1.bf16.msra.mxu0 %v899
        %946 = vmatprep.subr.bf16.mxu0 %v902
        %947 = vmatpush1.bf16.msra.mxu0 %v901
        %948 = vmatprep.subr.bf16.mxu0 %v904
        %949 = vmatpush1.bf16.msra.mxu0 %v903
        %950 = vmatprep.subr.bf16.mxu0 %v906
        %951 = vmatpush1.bf16.msra.mxu0 %v905
        %952 = vmatprep.subr.bf16.mxu0 %v908
        %953 = vmatpush1.bf16.msra.mxu0 %v907
        %954 = vmatprep.subr.bf16.mxu0 %v910
        %955 = vmatpush1.bf16.msra.mxu0 %v909
        %956 = vmatprep.mubr.bf16.mxu0 %v863
        %957 = vmatmul.mubr.bf16.gmra.mrb[0].mxu0 %v862
        %v958 = vpop.f32.mrb[0].mxu0
        %v959 = vadd.f32 %v917, %v958
        %v960 = vpop.f32.mrb[0].mxu0
        %v961 = vadd.f32 %v921, %v960
        %v962 = vpop.f32.mrb[0].mxu0
        %v963 = vadd.f32 %v917, %v962
        %v964 = vpop.f32.mrb[0].mxu0
        %v965 = vadd.f32 %v921, %v964
        %966 = vmatprep.mubr.bf16.mxu0 %v865
        %967 = vmatmul.mubr.bf16.gmra.mrb[0].mxu0 %v864
        %v968 = vpop.f32.mrb[0].mxu0
        %v969 = vadd.f32 %v917, %v968
        %v970 = vpop.f32.mrb[0].mxu0
        %v971 = vadd.f32 %v921, %v970
        %v972 = vpop.f32.mrb[0].mxu0
        %v973 = vadd.f32 %v917, %v972
        %v974 = vpop.f32.mrb[0].mxu0
        %v975 = vadd.f32 %v921, %v974
        %976 = vmatprep.mubr.bf16.mxu0 %v867
        %977 = vmatmul.mubr.bf16.gmra.mrb[0].mxu0 %v866
        %v978 = vpop.f32.mrb[0].mxu0
        %v979 = vadd.f32 %v917, %v978
        %v980 = vpop.f32.mrb[0].mxu0
        %v981 = vadd.f32 %v921, %v980
        %v982 = vpop.f32.mrb[0].mxu0
        %v983 = vadd.f32 %v917, %v982
        %v984 = vpop.f32.mrb[0].mxu0
        %v985 = vadd.f32 %v921, %v984
        %986 = vmatprep.mubr.bf16.mxu0 %v869
        %987 = vmatmul.mubr.bf16.gmra.mrb[0].mxu0 %v868
        %v988 = vpop.f32.mrb[0].mxu0
        %v989 = vadd.f32 %v917, %v988
        %v990 = vpop.f32.mrb[0].mxu0
        %v991 = vadd.f32 %v921, %v990
        %v992 = vpop.f32.mrb[0].mxu0
        %v993 = vadd.f32 %v917, %v992
        %v994 = vpop.f32.mrb[0].mxu0
        %v995 = vadd.f32 %v921, %v994
        %996 = vmatprep.mubr.bf16.mxu0 %v871
        %997 = vmatmul.mubr.bf16.gmra.mrb[0].mxu0 %v870
        %v998 = vpop.f32.mrb[0].mxu0
        %v999 = vadd.f32 %v917, %v998
        %v1000 = vpop.f32.mrb[0].mxu0
        %v1001 = vadd.f32 %v921, %v1000
        %v1002 = vpop.f32.mrb[0].mxu0
        %v1003 = vadd.f32 %v917, %v1002
        %v1004 = vpop.f32.mrb[0].mxu0
        %v1005 = vadd.f32 %v921, %v1004
        %1006 = vmatprep.mubr.bf16.mxu0 %v873
        %1007 = vmatmul.mubr.bf16.gmra.mrb[0].mxu0 %v872
        %v1008 = vpop.f32.mrb[0].mxu0
        %v1009 = vadd.f32 %v917, %v1008
        %v1010 = vpop.f32.mrb[0].mxu0
        %v1011 = vadd.f32 %v921, %v1010
        %v1012 = vpop.f32.mrb[0].mxu0
        %v1013 = vadd.f32 %v917, %v1012
        %v1014 = vpop.f32.mrb[0].mxu0
        %v1015 = vadd.f32 %v921, %v1014
        %1016 = vmatprep.mubr.bf16.mxu0 %v875
        %1017 = vmatmul.mubr.bf16.gmra.mrb[0].mxu0 %v874
        %v1018 = vpop.f32.mrb[0].mxu0
        %v1019 = vadd.f32 %v917, %v1018
        %v1020 = vpop.f32.mrb[0].mxu0
        %v1021 = vadd.f32 %v921, %v1020
        %v1022 = vpop.f32.mrb[0].mxu0
        %v1023 = vadd.f32 %v917, %v1022
        %v1024 = vpop.f32.mrb[0].mxu0
        %v1025 = vadd.f32 %v921, %v1024
        %1026 = vmatprep.mubr.bf16.mxu0 %v877
        %1027 = vmatmul.mubr.bf16.gmra.mrb[0].mxu0 %v876
        %v1028 = vpop.f32.mrb[0].mxu0
        %v1029 = vadd.f32 %v917, %v1028
        %v1030 = vpop.f32.mrb[0].mxu0
        %v1031 = vadd.f32 %v921, %v1030
        %v1032 = vpop.f32.mrb[0].mxu0
        %v1033 = vadd.f32 %v917, %v1032
        %v1034 = vpop.f32.mrb[0].mxu0
        %v1035 = vadd.f32 %v921, %v1034
        %1036 = vdwg.mxu0
        %v1037 = vmax.f32 %v959, 0.0
        %v1038 = vmax.f32 %v961, 0.0
        %v1039 = vmax.f32 %v963, 0.0
        %v1040 = vmax.f32 %v965, 0.0
        %v1041 = vmax.f32 %v969, 0.0
        %v1042 = vmax.f32 %v971, 0.0
        %v1043 = vmax.f32 %v973, 0.0
        %v1044 = vmax.f32 %v975, 0.0
        %v1045 = vmax.f32 %v979, 0.0
        %v1046 = vmax.f32 %v981, 0.0
        %v1047 = vmax.f32 %v983, 0.0
        %v1048 = vmax.f32 %v985, 0.0
        %v1049 = vmax.f32 %v989, 0.0
        %v1050 = vmax.f32 %v991, 0.0
        %v1051 = vmax.f32 %v993, 0.0
        %v1052 = vmax.f32 %v995, 0.0
        %v1053 = vmax.f32 %v999, 0.0
        %v1054 = vmax.f32 %v1001, 0.0
        %v1055 = vmax.f32 %v1003, 0.0
        %v1056 = vmax.f32 %v1005, 0.0
        %v1057 = vmax.f32 %v1009, 0.0
        %v1058 = vmax.f32 %v1011, 0.0
        %v1059 = vmax.f32 %v1013, 0.0
        %v1060 = vmax.f32 %v1015, 0.0
        %v1061 = vmax.f32 %v1019, 0.0
        %v1062 = vmax.f32 %v1021, 0.0
        %v1063 = vmax.f32 %v1023, 0.0
        %v1064 = vmax.f32 %v1025, 0.0
        %v1065 = vmax.f32 %v1029, 0.0
        %v1066 = vmax.f32 %v1031, 0.0
        %v1067 = vmax.f32 %v1033, 0.0
        %v1068 = vmax.f32 %v1035, 0.0
        %v1069 = vpack.c.bf16 %v1039, %v1037
        %v1070 = vpack.c.bf16 %v1040, %v1038
        %v1071 = vpack.c.bf16 %v1043, %v1041
        %v1072 = vpack.c.bf16 %v1044, %v1042
        %v1073 = vpack.c.bf16 %v1047, %v1045
        %v1074 = vpack.c.bf16 %v1048, %v1046
        %v1075 = vpack.c.bf16 %v1051, %v1049
        %v1076 = vpack.c.bf16 %v1052, %v1050
        %v1077 = vpack.c.bf16 %v1055, %v1053
        %v1078 = vpack.c.bf16 %v1056, %v1054
        %v1079 = vpack.c.bf16 %v1059, %v1057
        %v1080 = vpack.c.bf16 %v1060, %v1058
        %v1081 = vpack.c.bf16 %v1063, %v1061
        %v1082 = vpack.c.bf16 %v1064, %v1062
        %v1083 = vpack.c.bf16 %v1067, %v1065
        %v1084 = vpack.c.bf16 %v1068, %v1066
        %v1085 = vld [vmem:[#allocation6] sm:$0xff]
        %v1086 = vld [vmem:[#allocation6 + $0x8] sm:$0xff]
        %v1087 = vld [vmem:[#allocation6 + $0x10] sm:$0xff]
        %v1088 = vld [vmem:[#allocation6 + $0x18] sm:$0xff]
        %v1089 = vld [vmem:[#allocation6 + $0x20] sm:$0xff]
        %v1090 = vld [vmem:[#allocation6 + $0x28] sm:$0xff]
        %v1091 = vld [vmem:[#allocation6 + $0x30] sm:$0xff]
        %v1092 = vld [vmem:[#allocation6 + $0x38] sm:$0xff]
        %v1093 = vld [vmem:[#allocation6 + $0x40] sm:$0xff]
        %v1094 = vld [vmem:[#allocation6 + $0x48] sm:$0xff]
        %v1095 = vld [vmem:[#allocation6 + $0x50] sm:$0xff]
        %v1096 = vld [vmem:[#allocation6 + $0x58] sm:$0xff]
        %v1097 = vld [vmem:[#allocation6 + $0x60] sm:$0xff]
        %v1098 = vld [vmem:[#allocation6 + $0x68] sm:$0xff]
        %v1099 = vld [vmem:[#allocation6 + $0x70] sm:$0xff]
        %v1100 = vld [vmem:[#allocation6 + $0x78] sm:$0xff]
        %v1101 = vld [vmem:[#allocation7] sm:$0x1]
        %v1103 = vlaneseq
        %v1104 = vshrl.u32 %v1103, 7
        %v1105 = vsub.s32 0, %v1104
        %v1106 = vrot.slane %v1101, %v1105
        %1108 = vmatprep.subr.bf16.mxu0 0
        %1109 = vmatpush1.bf16.msra.mxu0 %v1085
        %1110 = vmatprep.subr.bf16.mxu0 0
        %1111 = vmatpush1.bf16.msra.mxu0 %v1086
        %1112 = vmatprep.subr.bf16.mxu0 0
        %1113 = vmatpush1.bf16.msra.mxu0 %v1087
        %1114 = vmatprep.subr.bf16.mxu0 0
        %1115 = vmatpush1.bf16.msra.mxu0 %v1088
        %1116 = vmatprep.subr.bf16.mxu0 0
        %1117 = vmatpush1.bf16.msra.mxu0 %v1089
        %1118 = vmatprep.subr.bf16.mxu0 0
        %1119 = vmatpush1.bf16.msra.mxu0 %v1090
        %1120 = vmatprep.subr.bf16.mxu0 0
        %1121 = vmatpush1.bf16.msra.mxu0 %v1091
        %1122 = vmatprep.subr.bf16.mxu0 0
        %1123 = vmatpush1.bf16.msra.mxu0 %v1092
        %1124 = vmatprep.subr.bf16.mxu0 0
        %1125 = vmatpush1.bf16.msra.mxu0 %v1093
        %1126 = vmatprep.subr.bf16.mxu0 0
        %1127 = vmatpush1.bf16.msra.mxu0 %v1094
        %1128 = vmatprep.subr.bf16.mxu0 0
        %1129 = vmatpush1.bf16.msra.mxu0 %v1095
        %1130 = vmatprep.subr.bf16.mxu0 0
        %1131 = vmatpush1.bf16.msra.mxu0 %v1096
        %1132 = vmatprep.subr.bf16.mxu0 0
        %1133 = vmatpush1.bf16.msra.mxu0 %v1097
        %1134 = vmatprep.subr.bf16.mxu0 0
        %1135 = vmatpush1.bf16.msra.mxu0 %v1098
        %1136 = vmatprep.subr.bf16.mxu0 0
        %1137 = vmatpush1.bf16.msra.mxu0 %v1099
        %1138 = vmatprep.subr.bf16.mxu0 0
        %1139 = vmatpush1.bf16.msra.mxu0 %v1100
        %1140 = vmatprep.mubr.bf16.mxu0 %v1070
        %1141 = vmatmul.mubr.bf16.gmra.mrb[0].mxu0 %v1069
        %v1142 = vpop.f32.mrb[0].mxu0
        %v1143 = vadd.f32 %v1106, %v1142
        %v1144 = vpop.f32.mrb[0].mxu0
        %v1145 = vpop.f32.mrb[0].mxu0
        %v1146 = vadd.f32 %v1106, %v1145
        %v1147 = vpop.f32.mrb[0].mxu0
        %1148 = vmatprep.mubr.bf16.mxu0 %v1072
        %1149 = vmatmul.mubr.bf16.gmra.mrb[0].mxu0 %v1071
        %v1150 = vpop.f32.mrb[0].mxu0
        %v1151 = vadd.f32 %v1106, %v1150
        %v1152 = vpop.f32.mrb[0].mxu0
        %v1153 = vpop.f32.mrb[0].mxu0
        %v1154 = vadd.f32 %v1106, %v1153
        %v1155 = vpop.f32.mrb[0].mxu0
        %1156 = vmatprep.mubr.bf16.mxu0 %v1074
        %1157 = vmatmul.mubr.bf16.gmra.mrb[0].mxu0 %v1073
        %v1158 = vpop.f32.mrb[0].mxu0
        %v1159 = vadd.f32 %v1106, %v1158
        %v1160 = vpop.f32.mrb[0].mxu0
        %v1161 = vpop.f32.mrb[0].mxu0
        %v1162 = vadd.f32 %v1106, %v1161
        %v1163 = vpop.f32.mrb[0].mxu0
        %1164 = vmatprep.mubr.bf16.mxu0 %v1076
        %1165 = vmatmul.mubr.bf16.gmra.mrb[0].mxu0 %v1075
        %v1166 = vpop.f32.mrb[0].mxu0
        %v1167 = vadd.f32 %v1106, %v1166
        %v1168 = vpop.f32.mrb[0].mxu0
        %v1169 = vpop.f32.mrb[0].mxu0
        %v1170 = vadd.f32 %v1106, %v1169
        %v1171 = vpop.f32.mrb[0].mxu0
        %1172 = vmatprep.mubr.bf16.mxu0 %v1078
        %1173 = vmatmul.mubr.bf16.gmra.mrb[0].mxu0 %v1077
        %v1174 = vpop.f32.mrb[0].mxu0
        %v1175 = vadd.f32 %v1106, %v1174
        %v1176 = vpop.f32.mrb[0].mxu0
        %v1177 = vpop.f32.mrb[0].mxu0
        %v1178 = vadd.f32 %v1106, %v1177
        %v1179 = vpop.f32.mrb[0].mxu0
        %1180 = vmatprep.mubr.bf16.mxu0 %v1080
        %1181 = vmatmul.mubr.bf16.gmra.mrb[0].mxu0 %v1079
        %v1182 = vpop.f32.mrb[0].mxu0
        %v1183 = vadd.f32 %v1106, %v1182
        %v1184 = vpop.f32.mrb[0].mxu0
        %v1185 = vpop.f32.mrb[0].mxu0
        %v1186 = vadd.f32 %v1106, %v1185
        %v1187 = vpop.f32.mrb[0].mxu0
        %1188 = vmatprep.mubr.bf16.mxu0 %v1082
        %1189 = vmatmul.mubr.bf16.gmra.mrb[0].mxu0 %v1081
        %v1190 = vpop.f32.mrb[0].mxu0
        %v1191 = vadd.f32 %v1106, %v1190
        %v1192 = vpop.f32.mrb[0].mxu0
        %v1193 = vpop.f32.mrb[0].mxu0
        %v1194 = vadd.f32 %v1106, %v1193
        %v1195 = vpop.f32.mrb[0].mxu0
        %1196 = vmatprep.mubr.bf16.mxu0 %v1084
        %1197 = vmatmul.mubr.bf16.gmra.mrb[0].mxu0 %v1083
        %v1198 = vpop.f32.mrb[0].mxu0
        %v1199 = vadd.f32 %v1106, %v1198
        %v1200 = vpop.f32.mrb[0].mxu0
        %v1201 = vpop.f32.mrb[0].mxu0
        %v1202 = vadd.f32 %v1106, %v1201
        %v1203 = vpop.f32.mrb[0].mxu0
        %1204 = vdwg.mxu0
        %1205 = vst [vmem:[%s116] sm:$0xff] %v1143
        %1206 = vst [vmem:[%s116 + $0x8] sm:$0xff] %v1146
        %1207 = vst [vmem:[%s116 + $0x10] sm:$0xff] %v1151
        %1208 = vst [vmem:[%s116 + $0x18] sm:$0xff] %v1154
        %1209 = vst [vmem:[%s116 + $0x20] sm:$0xff] %v1159
        %1210 = vst [vmem:[%s116 + $0x28] sm:$0xff] %v1162
        %1211 = vst [vmem:[%s116 + $0x30] sm:$0xff] %v1167
        %1212 = vst [vmem:[%s116 + $0x38] sm:$0xff] %v1170
        %1213 = vst [vmem:[%s116 + $0x40] sm:$0xff] %v1175
        %1214 = vst [vmem:[%s116 + $0x48] sm:$0xff] %v1178
        %1215 = vst [vmem:[%s116 + $0x50] sm:$0xff] %v1183
        %1216 = vst [vmem:[%s116 + $0x58] sm:$0xff] %v1186
        %1217 = vst [vmem:[%s116 + $0x60] sm:$0xff] %v1191
        %1218 = vst [vmem:[%s116 + $0x68] sm:$0xff] %v1194
        %1219 = vst [vmem:[%s116 + $0x70] sm:$0xff] %v1199
        %1220 = vst [vmem:[%s116 + $0x78] sm:$0xff] %v1202
        %s1221 = sand.u32 %s55, 1
        %s1222 = scalar_lea.sflag [#allocation10], %s1221
        %s1223 = sand.u32 %s55, 1
        %s1224 = smul.addr %s1223, 128
        %s1225 = scalar_lea.vmem [#allocation9], %s1224
        // Predicated region
        $region187: #{tpu_custom_call.1} parent=23 // pred_check
          %p1226 = pneg %p65
        $region188: #{tpu_custom_call.1} parent=23 // pred_check_branch
          %1228 = sbr.rel (%p1226) target = $region190
        $region189: #{tpu_custom_call.1} parent=23 // pred_region
          %s1229 = smul.u32 16, %s21
          %s1231 = ssub.s32 2048, 2048
          %1232 = vsyncadd %s1222, %s1231
          %s1233 = smul.addr %s1229, 128
          %s1234 = scalar_lea.hbm %s7, %s1233
          %s1235 = sshll.u32 %s1225, 4
          %s1236 = int_to_ptr.vmem [resolvable:$true] %s1235
          %1241 = dma.vmem_to_hbm [thread:$0]  %s1236, 2048, %s1234, %s1222, 128, 128, 8
        $region190: #{tpu_custom_call.1} parent=23 // pred_fallthru
          _
      $region24: #{tpu_custom_call.1} parent=5 // pred_fallthru
        _
      %p1242 = scmp.le.s32.totalorder 2, %s16
      // Predicated region
      $region191: #{tpu_custom_call.1} parent=5 // pred_check
        %p1243 = pneg %p1242
      $region192: #{tpu_custom_call.1} parent=5 // pred_check_branch
        %1245 = sbr.rel (%p1243) target = $region194
      $region193: #{tpu_custom_call.1} parent=5 // pred_region
        %s1246 = ssub.s32 %s16, 2
        // Predicated region
        $region195: #{tpu_custom_call.1} parent=193 // pred_check
          %p1247 = pneg %p71
        $region196: #{tpu_custom_call.1} parent=193 // pred_check_branch
          %1249 = sbr.rel (%p1247) target = $region198
        $region197: #{tpu_custom_call.1} parent=193 // pred_region
          %s1250 = sand.u32 %s56, 1
          %s1251 = scalar_lea.sflag [#allocation10], %s1250
          %s1252 = sand.u32 %s56, 1
          %s1253 = smul.addr %s1252, 128
          %s1254 = scalar_lea.vmem [#allocation9], %s1253
          %1255 = dma.done %s1251, 2048
        $region198: #{tpu_custom_call.1} parent=193 // pred_fallthru
          _
      $region194: #{tpu_custom_call.1} parent=5 // pred_fallthru
        _
    $region6: #{tpu_custom_call.1} parent=1 // loop_footer
      %s20 = sadd.s32 1, %s16
    $region7: #{tpu_custom_call.1} parent=1 // loop_footer_branch
      %15 = sbr.rel target = $region3
    $region8: #{tpu_custom_call.1} parent=1 // loop_exit
      _
    %1256 = vsyncpa [#allocation10], 1
    %s1257 = scalar_lea.sflag [#allocation10], 1
    %1258 = vsyncpa %s1257, 1
  %1259 = vsyncmov [#allocation8]
  %s1260 = vpop.sfrf %1259
  %p1261 = scmp.eq.s32.totalorder %s1260, 0
  %p1262 = pneg %p1261
  %1264 = shalt.err (%p1262)
  %s1265 = scalar_lea.sflag [#allocation8], 1
  %1266 = vsyncmov %s1265
  %s1267 = vpop.sfrf %1266
  %p1268 = scmp.eq.s32.totalorder %s1267, 0
  %p1269 = pneg %p1268
  %1271 = shalt.err (%p1269)
  %s1272 = scalar_lea.sflag [#allocation8], 2
  %1273 = vsyncmov %s1272
  %s1274 = vpop.sfrf %1273
  %p1275 = scmp.eq.s32.totalorder %s1274, 0
  %p1276 = pneg %p1275
  %1278 = shalt.err (%p1276)
  %s1279 = scalar_lea.sflag [#allocation8], 3
  %1280 = vsyncmov %s1279
  %s1281 = vpop.sfrf %1280
  %p1282 = scmp.eq.s32.totalorder %s1281, 0
  %p1283 = pneg %p1282
  %1285 = shalt.err (%p1283)
  %s1286 = scalar_lea.sflag [#allocation8], 4
  %1287 = vsyncmov %s1286
  %s1288 = vpop.sfrf %1287
  %p1289 = scmp.eq.s32.totalorder %s1288, 0
  %p1290 = pneg %p1289
  %1292 = shalt.err (%p1290)
  %s1293 = scalar_lea.sflag [#allocation8], 5
  %1294 = vsyncmov %s1293
  %s1295 = vpop.sfrf %1294
  %p1296 = scmp.eq.s32.totalorder %s1295, 0
  %p1297 = pneg %p1296
  %1299 = shalt.err (%p1297)

</llo_original>
